<compile_context>
chip_gen: v7x
topology: tpu7x:2x2x1
jax: 0.10.0
libtpu: 0.0.40
codegen_flags: <defaults>
</compile_context>

<pallas_src>
import jax
import jax.numpy as jnp
from jax import lax
from jax.experimental import pallas as pl
from jax.experimental.pallas import tpu as pltpu

NEG_SLOPE = 0.01  # torch.nn.LeakyReLU default negative_slope


def _leaky_relu(v):
    return jnp.where(v > 0, v, NEG_SLOPE * v)


def fc_conv_kernel(x_ref, ewt_ref, eb_ref, w1t_ref, b1_ref, w2t_ref, b2_ref,
                   nwt_ref, nb_ref, out_ref, att_ref):
    # x_ref  : (C, bb, R, T)  channels-major block of bb batch elements
    # ewt_ref: (C, R, C1)     EdgeConv weight, ewt[c, k, a] = W_edge[a, c, k]
    # eb_ref : (1, C1)
    # w1t_ref: (R, R4), b1_ref: (1, R4)   -- MLP Linear(rois, rois//4)
    # w2t_ref: (R4, R), b2_ref: (1, R)    -- MLP Linear(rois//4, rois)
    # nwt_ref: (C2, R, C1)    NodeConv weight, nwt[a, r, c1] = W_node[a, c1, r]
    # nb_ref : (1, C2)
    # out_ref: (1, bb, C2), att_ref: (1, bb, R)
    C, bb, R, T = x_ref.shape
    C1 = ewt_ref.shape[2]

    # ---- Pearson correlation, all (channel, batch) pairs in one batched dot --
    x = x_ref[...].astype(jnp.float32).reshape(C * bb, R, T)
    mean = jnp.sum(x, axis=-1, keepdims=True) * (1.0 / T)
    xc = x - mean
    inv_norm = lax.rsqrt(jnp.sum(xc * xc, axis=-1, keepdims=True))   # EUP slot
    xcn = xc * inv_norm
    # pcc[(c,b), r, i] = Pearson corr between roi r and roi i (channel c).
    pcc = lax.dot_general(xcn, xcn, (((2,), (2,)), ((0,), (0,))),
                          preferred_element_type=jnp.float32)        # (C*bb, R, R)

    # ---- EdgeConv: Conv2d kernel (1, R) == contraction over (c, k) -----------
    # Fold bb into the matmul M dimension (tile-preserving: bb == 1 or R % 8 == 0,
    # guaranteed by the wrapper).
    pcc_c = pcc.reshape(C, bb * R, R)
    edge_c = lax.dot_general(pcc_c, ewt_ref[...], (((2,), (1,)), ((0,), (0,))),
                             preferred_element_type=jnp.float32)     # (C, bb*R, C1)
    edge = jnp.sum(edge_c, axis=0) + eb_ref[...]                     # (bb*R, C1)
    edge = _leaky_relu(edge)                                         # relu_1
    edge3 = edge.reshape(bb, R, C1)

    # ---- FC_SAtt: channel avg-pool -> MLP over rois -> sigmoid ---------------
    avg = jnp.sum(edge3, axis=-1) * (1.0 / C1)                       # (bb, R)
    h = jnp.dot(avg, w1t_ref[...], preferred_element_type=jnp.float32)
    h = jnp.maximum(h + b1_ref[...], 0.0)                            # (bb, R4)
    y = jnp.dot(h, w2t_ref[...], preferred_element_type=jnp.float32)
    att = jax.nn.sigmoid(y + b2_ref[...])                            # (bb, R)

    # ---- einsum('brqk,brqc->brkc') with q = k = 1  =>  per-roi scaling -------
    scaled = att[:, :, None] * edge3                                 # (bb, R, C1)

    # ---- NodeConv: Conv2d kernel (R, 1) == full contraction over (c1, r) -----
    # Loop-free broadcast + reduce on the VPU (contraction is only R*C1 wide).
    # TODO(synk): at production sizes flatten scaled to (bb, R*C1) and use one
    # MXU matmul against nwt reshaped to (R*C1, C2) instead.
    prod = scaled[:, None, :, :] * nwt_ref[...][None, :, :, :]       # (bb, C2, R, C1)
    res = jnp.sum(jnp.sum(prod, axis=-1), axis=-1) + nb_ref[...]     # (bb, C2)
    res = _leaky_relu(res)                                           # relu_2

    out_ref[0] = res
    att_ref[0] = att


def _pick_block_b(B, R, max_bb=8):
    """Largest divisor of B that (a) keeps >= 2 grid steps when B >= 2 (both
    v7x TensorCores busy) and (b) keeps the in-kernel reshapes tile-preserving
    (bb > 1 only when R % 8 == 0)."""
    if R % 8 != 0:
        return 1
    target = min(max_bb, B if B < 2 else max(1, B // 2))
    for bb in range(target, 0, -1):
        if B % bb == 0:
            return bb
    return 1


def init_params(key, R, C, C1, C2):
    R4 = R // 4
    ks = jax.random.split(key, 8)
    rnd = lambda k, s: jax.random.normal(k, s, jnp.float32) * 0.1
    ew = rnd(ks[0], (C1, C, R))   # EdgeConv weight (C1, C, 1, R) squeezed
    eb = rnd(ks[1], (C1,))
    w1 = rnd(ks[2], (R4, R))      # MLP Linear(rois, rois//4)
    b1 = rnd(ks[3], (R4,))
    w2 = rnd(ks[4], (R, R4))      # MLP Linear(rois//4, rois)
    b2 = rnd(ks[5], (R,))
    nw = rnd(ks[6], (C2, C1, R))  # NodeConv weight (C2, C1, R, 1) squeezed
    nb = rnd(ks[7], (C2,))
    return ew, eb, w1, b1, w2, b2, nw, nb


def fc_conv_forward(x, params, *, max_block_b=8):
    # x: (B, R, T, C) float32 -- same layout the PyTorch module consumes.
    B, R, T, C = x.shape
    ew, eb, w1, b1, w2, b2, nw, nb = params
    C1 = ew.shape[0]
    C2 = nw.shape[0]
    R4 = w1.shape[0]

    bb = _pick_block_b(B, R, max_block_b)
    grid = B // bb

    # Weight re-layouts: tiny one-off XLA ops, free relative to the kernel.
    ewt = jnp.transpose(ew, (1, 2, 0)).astype(jnp.float32)      # (C, R, C1)
    nwt = jnp.transpose(nw, (0, 2, 1)).astype(jnp.float32)      # (C2, R, C1)
    w1t = jnp.transpose(w1).astype(jnp.float32)                 # (R, R4)
    w2t = jnp.transpose(w2).astype(jnp.float32)                 # (R4, R)

    # Channels-major copy of x so every (channel, batch) Pearson Gram matrix is
    # one entry of a single batched matmul inside the kernel.
    # TODO(synk): this permute costs one extra HBM round trip of |x|; could be
    # folded into the producer / done in-kernel at larger sizes.
    x_cf = jnp.transpose(x, (3, 0, 1, 2)).astype(jnp.float32)   # (C, B, R, T)

    grid_spec = pltpu.PrefetchScalarGridSpec(
        num_scalar_prefetch=0,
        grid=(grid,),
        in_specs=[
            pl.BlockSpec((C, bb, R, T), lambda i: (0, i, 0, 0)),
            pl.BlockSpec((C, R, C1), lambda i: (0, 0, 0)),
            pl.BlockSpec((1, C1), lambda i: (0, 0)),
            pl.BlockSpec((R, R4), lambda i: (0, 0)),
            pl.BlockSpec((1, R4), lambda i: (0, 0)),
            pl.BlockSpec((R4, R), lambda i: (0, 0)),
            pl.BlockSpec((1, R), lambda i: (0, 0)),
            pl.BlockSpec((C2, R, C1), lambda i: (0, 0, 0)),
            pl.BlockSpec((1, C2), lambda i: (0, 0)),
        ],
        out_specs=[
            pl.BlockSpec((1, bb, C2), lambda i: (i, 0, 0)),
            pl.BlockSpec((1, bb, R), lambda i: (i, 0, 0)),
        ],
    )

    out_blk, att_blk = pl.pallas_call(
        fc_conv_kernel,
        out_shape=(jax.ShapeDtypeStruct((grid, bb, C2), jnp.float32),
                   jax.ShapeDtypeStruct((grid, bb, R), jnp.float32)),
        grid_spec=grid_spec,
        compiler_params=pltpu.CompilerParams(
            dimension_semantics=("parallel",)),
    )(x_cf, ewt, eb.reshape(1, C1), w1t, b1.reshape(1, R4),
      w2t, b2.reshape(1, R), nwt, nb.reshape(1, C2))

    out = out_blk.reshape(B, 1, 1, C2)   # matches torch: (B, 1, 1, C2)
    att = att_blk.reshape(B, R, 1, 1)    # matches torch: (B, R, 1, 1)
    return out, att


def fc_conv_reference(x, params):
    # Pure-JAX reference mirroring the PyTorch forward exactly.
    ew, eb, w1, b1, w2, b2, nw, nb = params
    B, R, T, C = x.shape
    xp = jnp.transpose(x, (0, 3, 1, 2))                     # (B, C, R, T)
    mean = jnp.sum(xp, axis=-1, keepdims=True) / T
    xc = xp - mean
    vect = jnp.einsum('bcrt,bcit->bcri', xc, xc)
    norm = jnp.sqrt(jnp.sum(xc ** 2, axis=-1, keepdims=True))
    fab = norm * jnp.swapaxes(norm, -1, -2)
    pcc = vect / fab                                        # (B, C, R, R)
    edge = jnp.einsum('bcrk,ack->bra', pcc, ew) + eb        # (B, R, C1)
    edge = jnp.where(edge > 0, edge, NEG_SLOPE * edge)
    avg = jnp.mean(edge, axis=-1)                           # (B, R)
    h = jnp.maximum(avg @ w1.T + b1, 0.0)
    att = jax.nn.sigmoid(h @ w2.T + b2)                     # (B, R)
    scaled = att[:, :, None] * edge                         # (B, R, C1)
    res = jnp.einsum('brc,acr->ba', scaled, nw) + nb        # (B, C2)
    res = jnp.where(res > 0, res, NEG_SLOPE * res)
    return res.reshape(B, 1, 1, -1), att.reshape(B, R, 1, 1)


if __name__ == "__main__":
    B, R, T, C, C1, C2 = 2, 16, 8, 4, 8, 16   # rois=16, so rois//4 = 4
    key = jax.random.PRNGKey(0)
    kx, kp = jax.random.split(key)
    x = jax.random.normal(kx, (B, R, T, C), jnp.float32)
    params = init_params(kp, R, C, C1, C2)

    out, att = fc_conv_forward(x, params)
    out = jax.block_until_ready(out)
    att = jax.block_until_ready(att)

    ref_out, ref_att = fc_conv_reference(x, params)
    assert out.shape == (B, 1, 1, C2) and att.shape == (B, R, 1, 1)
    assert jnp.allclose(out, ref_out, atol=2e-3, rtol=2e-3), "out mismatch"
    assert jnp.allclose(att, ref_att, atol=2e-3, rtol=2e-3), "att mismatch"
    print("KERNEL_OK")
</pallas_src>

<mosaic_0001>
module attributes {stable_mosaic.version = 11 : i64} {
  func.func @fc_conv_kernel(%arg0: i32, %arg1: memref<4x1x16x8xf32, #tpu.memory_space<vmem>>, %arg2: memref<4x16x8xf32, #tpu.memory_space<vmem>>, %arg3: memref<1x8xf32, #tpu.memory_space<vmem>>, %arg4: memref<16x4xf32, #tpu.memory_space<vmem>>, %arg5: memref<1x4xf32, #tpu.memory_space<vmem>>, %arg6: memref<4x16xf32, #tpu.memory_space<vmem>>, %arg7: memref<1x16xf32, #tpu.memory_space<vmem>>, %arg8: memref<16x16x8xf32, #tpu.memory_space<vmem>>, %arg9: memref<1x16xf32, #tpu.memory_space<vmem>>, %arg10: memref<1x1x16xf32, #tpu.memory_space<vmem>>, %arg11: memref<1x1x16xf32, #tpu.memory_space<vmem>>) attributes {dimension_semantics = [#tpu.dimension_semantics<parallel>], iteration_bounds = array<i64: 2>, scalar_prefetch = 0 : i64, scratch_operands = 0 : i64, tpu.core_type = #tpu.core_type<tc>, window_params = [{transform_indices = @transform_0, window_bounds = array<i64: 4, 1, 16, 8>}, {pipeline_mode = #tpu.pipeline_mode<synchronous>, transform_indices = @transform_1, window_bounds = array<i64: 4, 16, 8>}, {pipeline_mode = #tpu.pipeline_mode<synchronous>, transform_indices = @transform_2, window_bounds = array<i64: 1, 8>}, {pipeline_mode = #tpu.pipeline_mode<synchronous>, transform_indices = @transform_3, window_bounds = array<i64: 16, 4>}, {pipeline_mode = #tpu.pipeline_mode<synchronous>, transform_indices = @transform_4, window_bounds = array<i64: 1, 4>}, {pipeline_mode = #tpu.pipeline_mode<synchronous>, transform_indices = @transform_5, window_bounds = array<i64: 4, 16>}, {pipeline_mode = #tpu.pipeline_mode<synchronous>, transform_indices = @transform_6, window_bounds = array<i64: 1, 16>}, {pipeline_mode = #tpu.pipeline_mode<synchronous>, transform_indices = @transform_7, window_bounds = array<i64: 16, 16, 8>}, {pipeline_mode = #tpu.pipeline_mode<synchronous>, transform_indices = @transform_8, window_bounds = array<i64: 1, 16>}, {transform_indices = @transform_9, window_bounds = array<i64: 1, 1, 16>}, {transform_indices = @transform_10, window_bounds = array<i64: 1, 1, 16>}]} {
    %c0 = arith.constant 0 : index
    %c0_0 = arith.constant 0 : index
    %c0_1 = arith.constant 0 : index
    %c0_2 = arith.constant 0 : index
    %0 = vector.load %arg1[%c0, %c0_0, %c0_1, %c0_2] : memref<4x1x16x8xf32, #tpu.memory_space<vmem>>, vector<4x1x16x8xf32>
    %1 = vector.shape_cast %0 : vector<4x1x16x8xf32> to vector<4x16x8xf32>
    %cst = arith.constant dense<0.000000e+00> : vector<4x16xf32>
    %2 = vector.multi_reduction <add>, %1, %cst [2] : vector<4x16x8xf32> to vector<4x16xf32>
    %3 = vector.shape_cast %2 : vector<4x16xf32> to vector<4x16x1xf32>
    %cst_3 = arith.constant 1.250000e-01 : f32
    %4 = vector.broadcast %cst_3 : f32 to vector<4x16x1xf32>
    %5 = arith.mulf %3, %4 : vector<4x16x1xf32>
    %6 = vector.broadcast %5 : vector<4x16x1xf32> to vector<4x16x8xf32>
    %7 = arith.subf %1, %6 : vector<4x16x8xf32>
    %8 = arith.mulf %7, %7 : vector<4x16x8xf32>
    %cst_4 = arith.constant dense<0.000000e+00> : vector<4x16xf32>
    %9 = vector.multi_reduction <add>, %8, %cst_4 [2] : vector<4x16x8xf32> to vector<4x16xf32>
    %10 = vector.shape_cast %9 : vector<4x16xf32> to vector<4x16x1xf32>
    %11 = math.rsqrt %10 : vector<4x16x1xf32>
    %12 = vector.broadcast %11 : vector<4x16x1xf32> to vector<4x16x8xf32>
    %13 = arith.mulf %7, %12 : vector<4x16x8xf32>
    %cst_5 = arith.constant dense<0.000000e+00> : vector<4x16x16xf32>
    %14 = tpu.matmul %13, %13, %cst_5 {dimension_numbers = #tpu.dot_dimension_numbers<[2], [2], [1], [1], [0, 0, 0, 1, 1, 1], [0], [0]>} : vector<4x16x8xf32>, vector<4x16x8xf32>, vector<4x16x16xf32> -> vector<4x16x16xf32>
    %c0_6 = arith.constant 0 : index
    %c0_7 = arith.constant 0 : index
    %c0_8 = arith.constant 0 : index
    %15 = vector.load %arg2[%c0_6, %c0_7, %c0_8] : memref<4x16x8xf32, #tpu.memory_space<vmem>>, vector<4x16x8xf32>
    %cst_9 = arith.constant dense<0.000000e+00> : vector<4x16x8xf32>
    %16 = tpu.matmul %14, %15, %cst_9 {dimension_numbers = #tpu.dot_dimension_numbers<[2], [1], [1], [2], [0, 0, 0, 1, 1, 2], [0], [0]>} : vector<4x16x16xf32>, vector<4x16x8xf32>, vector<4x16x8xf32> -> vector<4x16x8xf32>
    %cst_10 = arith.constant dense<0.000000e+00> : vector<16x8xf32>
    %17 = vector.multi_reduction <add>, %16, %cst_10 [0] : vector<4x16x8xf32> to vector<16x8xf32>
    %c0_11 = arith.constant 0 : index
    %c0_12 = arith.constant 0 : index
    %18 = vector.load %arg3[%c0_11, %c0_12] : memref<1x8xf32, #tpu.memory_space<vmem>>, vector<1x8xf32>
    %19 = vector.broadcast %18 : vector<1x8xf32> to vector<16x8xf32>
    %20 = arith.addf %17, %19 : vector<16x8xf32>
    %cst_13 = arith.constant 0.000000e+00 : f32
    %21 = vector.broadcast %cst_13 : f32 to vector<16x8xf32>
    %22 = arith.cmpf ogt, %20, %21 : vector<16x8xf32>
    %cst_14 = arith.constant 0.00999999977 : f32
    %23 = vector.broadcast %cst_14 : f32 to vector<16x8xf32>
    %24 = arith.mulf %23, %20 : vector<16x8xf32>
    %25 = arith.select %22, %20, %24 : vector<16x8xi1>, vector<16x8xf32>
    %26 = vector.shape_cast %25 : vector<16x8xf32> to vector<1x16x8xf32>
    %cst_15 = arith.constant dense<0.000000e+00> : vector<1x16xf32>
    %27 = vector.multi_reduction <add>, %26, %cst_15 [2] : vector<1x16x8xf32> to vector<1x16xf32>
    %cst_16 = arith.constant 1.250000e-01 : f32
    %28 = vector.broadcast %cst_16 : f32 to vector<1x16xf32>
    %29 = arith.mulf %27, %28 : vector<1x16xf32>
    %c0_17 = arith.constant 0 : index
    %c0_18 = arith.constant 0 : index
    %30 = vector.load %arg4[%c0_17, %c0_18] : memref<16x4xf32, #tpu.memory_space<vmem>>, vector<16x4xf32>
    %cst_19 = arith.constant dense<0.000000e+00> : vector<1x4xf32>
    %31 = tpu.matmul %29, %30, %cst_19 {dimension_numbers = #tpu.dot_dimension_numbers<[1], [0], [0], [1], [0, 0, 1, 1], [], []>} : vector<1x16xf32>, vector<16x4xf32>, vector<1x4xf32> -> vector<1x4xf32>
    %c0_20 = arith.constant 0 : index
    %c0_21 = arith.constant 0 : index
    %32 = vector.load %arg5[%c0_20, %c0_21] : memref<1x4xf32, #tpu.memory_space<vmem>>, vector<1x4xf32>
    %33 = arith.addf %31, %32 : vector<1x4xf32>
    %cst_22 = arith.constant 0.000000e+00 : f32
    %34 = vector.broadcast %cst_22 : f32 to vector<1x4xf32>
    %35 = arith.maximumf %33, %34 : vector<1x4xf32>
    %c0_23 = arith.constant 0 : index
    %c0_24 = arith.constant 0 : index
    %36 = vector.load %arg6[%c0_23, %c0_24] : memref<4x16xf32, #tpu.memory_space<vmem>>, vector<4x16xf32>
    %cst_25 = arith.constant dense<0.000000e+00> : vector<1x16xf32>
    %37 = tpu.matmul %35, %36, %cst_25 {dimension_numbers = #tpu.dot_dimension_numbers<[1], [0], [0], [1], [0, 0, 1, 1], [], []>} : vector<1x4xf32>, vector<4x16xf32>, vector<1x16xf32> -> vector<1x16xf32>
    %c0_26 = arith.constant 0 : index
    %c0_27 = arith.constant 0 : index
    %38 = vector.load %arg7[%c0_26, %c0_27] : memref<1x16xf32, #tpu.memory_space<vmem>>, vector<1x16xf32>
    %39 = arith.addf %37, %38 : vector<1x16xf32>
    %40 = arith.negf %39 : vector<1x16xf32>
    %41 = math.exp %40 : vector<1x16xf32>
    %cst_28 = arith.constant 1.000000e+00 : f32
    %42 = vector.broadcast %cst_28 : f32 to vector<1x16xf32>
    %43 = arith.addf %42, %41 : vector<1x16xf32>
    %44 = arith.divf %42, %43 : vector<1x16xf32>
    %45 = vector.shape_cast %44 : vector<1x16xf32> to vector<1x16x1xf32>
    %46 = vector.broadcast %45 : vector<1x16x1xf32> to vector<1x16x8xf32>
    %47 = arith.mulf %46, %26 : vector<1x16x8xf32>
    %48 = vector.shape_cast %47 : vector<1x16x8xf32> to vector<1x1x16x8xf32>
    %c0_29 = arith.constant 0 : index
    %c0_30 = arith.constant 0 : index
    %c0_31 = arith.constant 0 : index
    %49 = vector.load %arg8[%c0_29, %c0_30, %c0_31] : memref<16x16x8xf32, #tpu.memory_space<vmem>>, vector<16x16x8xf32>
    %50 = vector.shape_cast %49 : vector<16x16x8xf32> to vector<1x16x16x8xf32>
    %51 = vector.broadcast %48 : vector<1x1x16x8xf32> to vector<1x16x16x8xf32>
    %52 = arith.mulf %51, %50 : vector<1x16x16x8xf32>
    %cst_32 = arith.constant dense<0.000000e+00> : vector<1x16x16xf32>
    %53 = vector.multi_reduction <add>, %52, %cst_32 [3] : vector<1x16x16x8xf32> to vector<1x16x16xf32>
    %cst_33 = arith.constant dense<0.000000e+00> : vector<1x16xf32>
    %54 = vector.multi_reduction <add>, %53, %cst_33 [2] : vector<1x16x16xf32> to vector<1x16xf32>
    %c0_34 = arith.constant 0 : index
    %c0_35 = arith.constant 0 : index
    %55 = vector.load %arg9[%c0_34, %c0_35] : memref<1x16xf32, #tpu.memory_space<vmem>>, vector<1x16xf32>
    %56 = arith.addf %54, %55 : vector<1x16xf32>
    %cst_36 = arith.constant 0.000000e+00 : f32
    %57 = vector.broadcast %cst_36 : f32 to vector<1x16xf32>
    %58 = arith.cmpf ogt, %56, %57 : vector<1x16xf32>
    %cst_37 = arith.constant 0.00999999977 : f32
    %59 = vector.broadcast %cst_37 : f32 to vector<1x16xf32>
    %60 = arith.mulf %59, %56 : vector<1x16xf32>
    %61 = arith.select %58, %56, %60 : vector<1x16xi1>, vector<1x16xf32>
    %c0_38 = arith.constant 0 : index
    %c0_39 = arith.constant 0 : index
    %c0_40 = arith.constant 0 : index
    %62 = vector.load %arg10[%c0_38, %c0_39, %c0_40] : memref<1x1x16xf32, #tpu.memory_space<vmem>>, vector<1x1x16xf32>
    %63 = vector.shape_cast %62 : vector<1x1x16xf32> to vector<1x16xf32>
    %64 = vector.shape_cast %61 : vector<1x16xf32> to vector<1x1x16xf32>
    tpu.vector_store %arg10[%c0_38, %c0_39, %c0_40], %64 {strides = array<i32>} : memref<1x1x16xf32, #tpu.memory_space<vmem>>, vector<1x1x16xf32>,
    %c0_41 = arith.constant 0 : index
    %c0_42 = arith.constant 0 : index
    %c0_43 = arith.constant 0 : index
    %65 = vector.load %arg11[%c0_41, %c0_42, %c0_43] : memref<1x1x16xf32, #tpu.memory_space<vmem>>, vector<1x1x16xf32>
    %66 = vector.shape_cast %65 : vector<1x1x16xf32> to vector<1x16xf32>
    %67 = vector.shape_cast %44 : vector<1x16xf32> to vector<1x1x16xf32>
    tpu.vector_store %arg11[%c0_41, %c0_42, %c0_43], %67 {strides = array<i32>} : memref<1x1x16xf32, #tpu.memory_space<vmem>>, vector<1x1x16xf32>,
    return
  }
  func.func @transform_0(%arg0: i32) -> (i32, i32, i32, i32) {
    %c0_i32 = arith.constant 0 : i32
    %c0_i32_0 = arith.constant 0 : i32
    %c0_i32_1 = arith.constant 0 : i32
    %c0_i32_2 = arith.constant 0 : i32
    return %c0_i32, %arg0, %c0_i32_0, %c0_i32_1 : i32, i32, i32, i32
  }
  func.func @transform_1(%arg0: i32) -> (i32, i32, i32) {
    %c0_i32 = arith.constant 0 : i32
    %c0_i32_0 = arith.constant 0 : i32
    %c0_i32_1 = arith.constant 0 : i32
    %c0_i32_2 = arith.constant 0 : i32
    return %c0_i32, %c0_i32_0, %c0_i32_1 : i32, i32, i32
  }
  func.func @transform_2(%arg0: i32) -> (i32, i32) {
    %c0_i32 = arith.constant 0 : i32
    %c0_i32_0 = arith.constant 0 : i32
    %c0_i32_1 = arith.constant 0 : i32
    return %c0_i32, %c0_i32_0 : i32, i32
  }
  func.func @transform_3(%arg0: i32) -> (i32, i32) {
    %c0_i32 = arith.constant 0 : i32
    %c0_i32_0 = arith.constant 0 : i32
    %c0_i32_1 = arith.constant 0 : i32
    return %c0_i32, %c0_i32_0 : i32, i32
  }
  func.func @transform_4(%arg0: i32) -> (i32, i32) {
    %c0_i32 = arith.constant 0 : i32
    %c0_i32_0 = arith.constant 0 : i32
    %c0_i32_1 = arith.constant 0 : i32
    return %c0_i32, %c0_i32_0 : i32, i32
  }
  func.func @transform_5(%arg0: i32) -> (i32, i32) {
    %c0_i32 = arith.constant 0 : i32
    %c0_i32_0 = arith.constant 0 : i32
    %c0_i32_1 = arith.constant 0 : i32
    return %c0_i32, %c0_i32_0 : i32, i32
  }
  func.func @transform_6(%arg0: i32) -> (i32, i32) {
    %c0_i32 = arith.constant 0 : i32
    %c0_i32_0 = arith.constant 0 : i32
    %c0_i32_1 = arith.constant 0 : i32
    return %c0_i32, %c0_i32_0 : i32, i32
  }
  func.func @transform_7(%arg0: i32) -> (i32, i32, i32) {
    %c0_i32 = arith.constant 0 : i32
    %c0_i32_0 = arith.constant 0 : i32
    %c0_i32_1 = arith.constant 0 : i32
    %c0_i32_2 = arith.constant 0 : i32
    return %c0_i32, %c0_i32_0, %c0_i32_1 : i32, i32, i32
  }
  func.func @transform_8(%arg0: i32) -> (i32, i32) {
    %c0_i32 = arith.constant 0 : i32
    %c0_i32_0 = arith.constant 0 : i32
    %c0_i32_1 = arith.constant 0 : i32
    return %c0_i32, %c0_i32_0 : i32, i32
  }
  func.func @transform_9(%arg0: i32) -> (i32, i32, i32) {
    %c0_i32 = arith.constant 0 : i32
    %c0_i32_0 = arith.constant 0 : i32
    %c0_i32_1 = arith.constant 0 : i32
    return %arg0, %c0_i32, %c0_i32_0 : i32, i32, i32
  }
  func.func @transform_10(%arg0: i32) -> (i32, i32, i32) {
    %c0_i32 = arith.constant 0 : i32
    %c0_i32_0 = arith.constant 0 : i32
    %c0_i32_1 = arith.constant 0 : i32
    return %arg0, %c0_i32, %c0_i32_0 : i32, i32, i32
  }
}

</mosaic_0001>

<llo_original>
// kernel: tpu_custom_call.1
$region0: #{tpu_custom_call.1}
  #allocation0 [shape = 'u32[]', space=smem, size = 0x4, offset = 0x4, fixed_abs, tag = 'smem constant byte address 0x4 - core index']
  #allocation1 [shape = 'u32[144,128]{1,0:T(1,128)}', space=vmem, size = 0x12000, scoped, tag = 'internal scratch']
  %s0 = inlined_call_operand.vmem [shape: f32[4,2,16,8], index: 0, kind: input, shape index: {}]
  %s1 = inlined_call_operand.vmem [shape: f32[4,16,8], index: 1, kind: input, shape index: {}]
  %s2 = inlined_call_operand.vmem [shape: f32[1,8], index: 2, kind: input, shape index: {}]
  %s3 = inlined_call_operand.vmem [shape: f32[16,4], index: 3, kind: input, shape index: {}]
  %s4 = inlined_call_operand.vmem [shape: f32[1,4], index: 4, kind: input, shape index: {}]
  %s5 = inlined_call_operand.vmem [shape: f32[4,16], index: 5, kind: input, shape index: {}]
  %s6 = inlined_call_operand.vmem [shape: f32[1,16], index: 6, kind: input, shape index: {}]
  %s7 = inlined_call_operand.vmem [shape: f32[16,16,8], index: 7, kind: input, shape index: {}]
  %s8 = inlined_call_operand.vmem [shape: f32[1,16], index: 8, kind: input, shape index: {}]
  %s9 = inlined_call_operand.hbm [shape: f32[2,1,16], index: 9, kind: output, shape index: {0}]
  %s10 = inlined_call_operand.hbm [shape: f32[2,1,16], index: 10, kind: output, shape index: {1}]
  %11 = xla_tuple %s9, %s10
  %s12 = sld [smem:[#allocation0]]
  $region115: #{tpu_custom_call.1} parent=0
    _
  %s14 = ssub.s32 1, %s12
  %s15 = scalar_select 0, %s14, %s12
  $region1: #{tpu_custom_call.1} parent=0
    #allocation2 [shape = 'u8[65536]{0}', space=vmem, size = 0x10000, scoped, tag = 'input window, operand 0']
    #allocation3 [shape = 'u8[1024]{0}', space=vmem, size = 0x400, scoped, tag = 'output window, operand 0']
    #allocation4 [shape = 's32[2]{0}', space=sflag, size = 0x8, scoped, tag = 'scoped memory for tpu_custom_call.1']
    #allocation5 [shape = 'u8[1024]{0}', space=vmem, size = 0x400, scoped, tag = 'output window, operand 1']
    #allocation6 [shape = 's32[2]{0}', space=sflag, size = 0x8, scoped, tag = 'scoped memory for tpu_custom_call.1']
    %16 = vsyncpa [#allocation4], 0
    %s17 = scalar_lea.sflag [#allocation4], 1
    %18 = vsyncpa %s17, 0
    %19 = vsyncpa [#allocation6], 0
    %s20 = scalar_lea.sflag [#allocation6], 1
    %21 = vsyncpa %s20, 0
    loop: start=0, step=1, limit=4
    $region2: #{tpu_custom_call.1} parent=1 // loop_pre_header
      _
    $region3: #{tpu_custom_call.1} parent=1 // loop_header
      %s23 = sphi 0, %s27
      %p24 = scmp.ge.s32.totalorder %s23, 4
      %s33 = sphi 0, %s35
      %s36 = sphi 0, %s33
      %s37 = sphi 0, %s36
      %s53 = sphi 0, %s37
      %s57 = sphi 0, %s57
      %s59 = sphi 0, %s57
      %s60 = sphi 0, %s59
      %s74 = sphi 0, %s60
      %s78 = sphi 0, %s78
      %s80 = sphi 0, %s78
      %s81 = sphi 0, %s80
      %s95 = sphi 0, %s81
      %s99 = sphi 0, %s99
      %s101 = sphi 0, %s99
      %s102 = sphi 0, %s101
      %s116 = sphi 0, %s102
      %s120 = sphi 0, %s120
      %s122 = sphi 0, %s120
      %s123 = sphi 0, %s122
      %s137 = sphi 0, %s123
      %s141 = sphi 0, %s141
      %s143 = sphi 0, %s141
      %s144 = sphi 0, %s143
      %s158 = sphi 0, %s144
      %s162 = sphi 0, %s162
      %s164 = sphi 0, %s162
      %s165 = sphi 0, %s164
      %s179 = sphi 0, %s165
      %s183 = sphi 0, %s183
      %s185 = sphi 0, %s183
      %s186 = sphi 0, %s185
      %s200 = sphi 0, %s186
      %s204 = sphi 0, %s204
      %s206 = sphi 0, %s204
      %s207 = sphi 0, %s206
      %s221 = sphi 0, %s207
      %s227 = sphi 0, %s229
      %s230 = sphi 0, %s227
      %s231 = sphi 0, %s230
      %s247 = sphi 0, %s231
      %s253 = sphi 0, %s255
      %s256 = sphi 0, %s253
      %s257 = sphi 0, %s256
      %s273 = sphi 0, %s257
    $region4: #{tpu_custom_call.1} parent=1 // loop_header_branch
      %26 = sbr.rel (%p24) target = $region8
    $region5: #{tpu_custom_call.1} parent=1 // loop_body
      %s28 = ssub.s32 %s23, 1
      %s29 = ssub.s32 %s23, 2
      %s30 = sadd.s32 %s23, 1
      %s31 = ssub.s32 %s23, %s30
      %p32 = scmp.eq.s32.totalorder %s31, 0
      %s34 = sadd.s32 %s33, 1
      %s35 = scalar_select %p32, %s33, %s34
      %p38 = pneg %p32
      %p39 = scmp.eq.s32.totalorder %s23, 1
      %p40 = por %p38, %p39
      %p41 = scmp.ne.s32.totalorder %s33, %s36
      %p42 = scmp.eq.s32.totalorder %s23, 0
      %p43 = por %p41, %p42
      %p44 = scmp.ne.s32.totalorder %s33, %s36
      %p45 = scmp.eq.s32.totalorder %s28, 1
      %p46 = por %p44, %p45
      %p47 = scmp.ne.s32.totalorder %s36, %s37
      %p48 = scmp.eq.s32.totalorder %s28, 0
      %p49 = por %p47, %p48
      %p50 = scmp.ne.s32.totalorder %s36, %s37
      %p51 = scmp.eq.s32.totalorder %s29, 1
      %p52 = por %p50, %p51
      %p54 = scmp.ne.s32.totalorder %s37, %s53
      %p55 = scmp.eq.s32.totalorder %s29, 0
      %p56 = por %p54, %p55
      %s58 = sadd.s32 %s57, 1
      %p61 = scmp.eq.s32.totalorder %s23, 1
      %p62 = scmp.ne.s32.totalorder %s57, %s59
      %p63 = scmp.eq.s32.totalorder %s23, 0
      %p64 = por %p62, %p63
      %p65 = scmp.ne.s32.totalorder %s57, %s59
      %p66 = scmp.eq.s32.totalorder %s28, 1
      %p67 = por %p65, %p66
      %p68 = scmp.ne.s32.totalorder %s59, %s60
      %p69 = scmp.eq.s32.totalorder %s28, 0
      %p70 = por %p68, %p69
      %p71 = scmp.ne.s32.totalorder %s59, %s60
      %p72 = scmp.eq.s32.totalorder %s29, 1
      %p73 = por %p71, %p72
      %p75 = scmp.ne.s32.totalorder %s60, %s74
      %p76 = scmp.eq.s32.totalorder %s29, 0
      %p77 = por %p75, %p76
      %s79 = sadd.s32 %s78, 1
      %p82 = scmp.eq.s32.totalorder %s23, 1
      %p83 = scmp.ne.s32.totalorder %s78, %s80
      %p84 = scmp.eq.s32.totalorder %s23, 0
      %p85 = por %p83, %p84
      %p86 = scmp.ne.s32.totalorder %s78, %s80
      %p87 = scmp.eq.s32.totalorder %s28, 1
      %p88 = por %p86, %p87
      %p89 = scmp.ne.s32.totalorder %s80, %s81
      %p90 = scmp.eq.s32.totalorder %s28, 0
      %p91 = por %p89, %p90
      %p92 = scmp.ne.s32.totalorder %s80, %s81
      %p93 = scmp.eq.s32.totalorder %s29, 1
      %p94 = por %p92, %p93
      %p96 = scmp.ne.s32.totalorder %s81, %s95
      %p97 = scmp.eq.s32.totalorder %s29, 0
      %p98 = por %p96, %p97
      %s100 = sadd.s32 %s99, 1
      %p103 = scmp.eq.s32.totalorder %s23, 1
      %p104 = scmp.ne.s32.totalorder %s99, %s101
      %p105 = scmp.eq.s32.totalorder %s23, 0
      %p106 = por %p104, %p105
      %p107 = scmp.ne.s32.totalorder %s99, %s101
      %p108 = scmp.eq.s32.totalorder %s28, 1
      %p109 = por %p107, %p108
      %p110 = scmp.ne.s32.totalorder %s101, %s102
      %p111 = scmp.eq.s32.totalorder %s28, 0
      %p112 = por %p110, %p111
      %p113 = scmp.ne.s32.totalorder %s101, %s102
      %p114 = scmp.eq.s32.totalorder %s29, 1
      %p115 = por %p113, %p114
      %p117 = scmp.ne.s32.totalorder %s102, %s116
      %p118 = scmp.eq.s32.totalorder %s29, 0
      %p119 = por %p117, %p118
      %s121 = sadd.s32 %s120, 1
      %p124 = scmp.eq.s32.totalorder %s23, 1
      %p125 = scmp.ne.s32.totalorder %s120, %s122
      %p126 = scmp.eq.s32.totalorder %s23, 0
      %p127 = por %p125, %p126
      %p128 = scmp.ne.s32.totalorder %s120, %s122
      %p129 = scmp.eq.s32.totalorder %s28, 1
      %p130 = por %p128, %p129
      %p131 = scmp.ne.s32.totalorder %s122, %s123
      %p132 = scmp.eq.s32.totalorder %s28, 0
      %p133 = por %p131, %p132
      %p134 = scmp.ne.s32.totalorder %s122, %s123
      %p135 = scmp.eq.s32.totalorder %s29, 1
      %p136 = por %p134, %p135
      %p138 = scmp.ne.s32.totalorder %s123, %s137
      %p139 = scmp.eq.s32.totalorder %s29, 0
      %p140 = por %p138, %p139
      %s142 = sadd.s32 %s141, 1
      %p145 = scmp.eq.s32.totalorder %s23, 1
      %p146 = scmp.ne.s32.totalorder %s141, %s143
      %p147 = scmp.eq.s32.totalorder %s23, 0
      %p148 = por %p146, %p147
      %p149 = scmp.ne.s32.totalorder %s141, %s143
      %p150 = scmp.eq.s32.totalorder %s28, 1
      %p151 = por %p149, %p150
      %p152 = scmp.ne.s32.totalorder %s143, %s144
      %p153 = scmp.eq.s32.totalorder %s28, 0
      %p154 = por %p152, %p153
      %p155 = scmp.ne.s32.totalorder %s143, %s144
      %p156 = scmp.eq.s32.totalorder %s29, 1
      %p157 = por %p155, %p156
      %p159 = scmp.ne.s32.totalorder %s144, %s158
      %p160 = scmp.eq.s32.totalorder %s29, 0
      %p161 = por %p159, %p160
      %s163 = sadd.s32 %s162, 1
      %p166 = scmp.eq.s32.totalorder %s23, 1
      %p167 = scmp.ne.s32.totalorder %s162, %s164
      %p168 = scmp.eq.s32.totalorder %s23, 0
      %p169 = por %p167, %p168
      %p170 = scmp.ne.s32.totalorder %s162, %s164
      %p171 = scmp.eq.s32.totalorder %s28, 1
      %p172 = por %p170, %p171
      %p173 = scmp.ne.s32.totalorder %s164, %s165
      %p174 = scmp.eq.s32.totalorder %s28, 0
      %p175 = por %p173, %p174
      %p176 = scmp.ne.s32.totalorder %s164, %s165
      %p177 = scmp.eq.s32.totalorder %s29, 1
      %p178 = por %p176, %p177
      %p180 = scmp.ne.s32.totalorder %s165, %s179
      %p181 = scmp.eq.s32.totalorder %s29, 0
      %p182 = por %p180, %p181
      %s184 = sadd.s32 %s183, 1
      %p187 = scmp.eq.s32.totalorder %s23, 1
      %p188 = scmp.ne.s32.totalorder %s183, %s185
      %p189 = scmp.eq.s32.totalorder %s23, 0
      %p190 = por %p188, %p189
      %p191 = scmp.ne.s32.totalorder %s183, %s185
      %p192 = scmp.eq.s32.totalorder %s28, 1
      %p193 = por %p191, %p192
      %p194 = scmp.ne.s32.totalorder %s185, %s186
      %p195 = scmp.eq.s32.totalorder %s28, 0
      %p196 = por %p194, %p195
      %p197 = scmp.ne.s32.totalorder %s185, %s186
      %p198 = scmp.eq.s32.totalorder %s29, 1
      %p199 = por %p197, %p198
      %p201 = scmp.ne.s32.totalorder %s186, %s200
      %p202 = scmp.eq.s32.totalorder %s29, 0
      %p203 = por %p201, %p202
      %s205 = sadd.s32 %s204, 1
      %p208 = scmp.eq.s32.totalorder %s23, 1
      %p209 = scmp.ne.s32.totalorder %s204, %s206
      %p210 = scmp.eq.s32.totalorder %s23, 0
      %p211 = por %p209, %p210
      %p212 = scmp.ne.s32.totalorder %s204, %s206
      %p213 = scmp.eq.s32.totalorder %s28, 1
      %p214 = por %p212, %p213
      %p215 = scmp.ne.s32.totalorder %s206, %s207
      %p216 = scmp.eq.s32.totalorder %s28, 0
      %p217 = por %p215, %p216
      %p218 = scmp.ne.s32.totalorder %s206, %s207
      %p219 = scmp.eq.s32.totalorder %s29, 1
      %p220 = por %p218, %p219
      %p222 = scmp.ne.s32.totalorder %s207, %s221
      %p223 = scmp.eq.s32.totalorder %s29, 0
      %p224 = por %p222, %p223
      %s225 = ssub.s32 %s23, %s30
      %p226 = scmp.eq.s32.totalorder %s225, 0
      %s228 = sadd.s32 %s227, 1
      %s229 = scalar_select %p226, %s227, %s228
      %p232 = pneg %p226
      %p233 = scmp.eq.s32.totalorder %s23, 1
      %p234 = por %p232, %p233
      %p235 = scmp.ne.s32.totalorder %s227, %s230
      %p236 = scmp.eq.s32.totalorder %s23, 0
      %p237 = por %p235, %p236
      %p238 = scmp.ne.s32.totalorder %s227, %s230
      %p239 = scmp.eq.s32.totalorder %s28, 1
      %p240 = por %p238, %p239
      %p241 = scmp.ne.s32.totalorder %s230, %s231
      %p242 = scmp.eq.s32.totalorder %s28, 0
      %p243 = por %p241, %p242
      %p244 = scmp.ne.s32.totalorder %s230, %s231
      %p245 = scmp.eq.s32.totalorder %s29, 1
      %p246 = por %p244, %p245
      %p248 = scmp.ne.s32.totalorder %s231, %s247
      %p249 = scmp.eq.s32.totalorder %s29, 0
      %p250 = por %p248, %p249
      %s251 = ssub.s32 %s23, %s30
      %p252 = scmp.eq.s32.totalorder %s251, 0
      %s254 = sadd.s32 %s253, 1
      %s255 = scalar_select %p252, %s253, %s254
      %p258 = pneg %p252
      %p259 = scmp.eq.s32.totalorder %s23, 1
      %p260 = por %p258, %p259
      %p261 = scmp.ne.s32.totalorder %s253, %s256
      %p262 = scmp.eq.s32.totalorder %s23, 0
      %p263 = por %p261, %p262
      %p264 = scmp.ne.s32.totalorder %s253, %s256
      %p265 = scmp.eq.s32.totalorder %s28, 1
      %p266 = por %p264, %p265
      %p267 = scmp.ne.s32.totalorder %s256, %s257
      %p268 = scmp.eq.s32.totalorder %s28, 0
      %p269 = por %p267, %p268
      %p270 = scmp.ne.s32.totalorder %s256, %s257
      %p271 = scmp.eq.s32.totalorder %s29, 1
      %p272 = por %p270, %p271
      %p274 = scmp.ne.s32.totalorder %s257, %s273
      %p275 = scmp.eq.s32.totalorder %s29, 0
      %p276 = por %p274, %p275
      %p277 = scmp.le.s32.totalorder 1, %s23
      %p278 = scmp.lt.s32.totalorder %s23, 3
      %p279 = pnand %p277, %p278
      %p280 = pneg %p279
      // Predicated region
      $region9: #{tpu_custom_call.1} parent=5 // pred_check
        _
      $region10: #{tpu_custom_call.1} parent=5 // pred_check_branch
        %282 = sbr.rel (%p279) target = $region12
      $region11: #{tpu_custom_call.1} parent=5 // pred_region
        %s283 = ssub.s32 %s23, 1
        // Predicated region
        $region13: #{tpu_custom_call.1} parent=11 // pred_check
          %p284 = pneg %p70
        $region14: #{tpu_custom_call.1} parent=11 // pred_check_branch
          %286 = sbr.rel (%p284) target = $region16
        $region15: #{tpu_custom_call.1} parent=11 // pred_region
          _
        $region16: #{tpu_custom_call.1} parent=11 // pred_fallthru
          _
        // Predicated region
        $region17: #{tpu_custom_call.1} parent=11 // pred_check
          %p287 = pneg %p91
        $region18: #{tpu_custom_call.1} parent=11 // pred_check_branch
          %289 = sbr.rel (%p287) target = $region20
        $region19: #{tpu_custom_call.1} parent=11 // pred_region
          _
        $region20: #{tpu_custom_call.1} parent=11 // pred_fallthru
          _
        // Predicated region
        $region21: #{tpu_custom_call.1} parent=11 // pred_check
          %p290 = pneg %p112
        $region22: #{tpu_custom_call.1} parent=11 // pred_check_branch
          %292 = sbr.rel (%p290) target = $region24
        $region23: #{tpu_custom_call.1} parent=11 // pred_region
          _
        $region24: #{tpu_custom_call.1} parent=11 // pred_fallthru
          _
        // Predicated region
        $region25: #{tpu_custom_call.1} parent=11 // pred_check
          %p293 = pneg %p133
        $region26: #{tpu_custom_call.1} parent=11 // pred_check_branch
          %295 = sbr.rel (%p293) target = $region28
        $region27: #{tpu_custom_call.1} parent=11 // pred_region
          _
        $region28: #{tpu_custom_call.1} parent=11 // pred_fallthru
          _
        // Predicated region
        $region29: #{tpu_custom_call.1} parent=11 // pred_check
          %p296 = pneg %p154
        $region30: #{tpu_custom_call.1} parent=11 // pred_check_branch
          %298 = sbr.rel (%p296) target = $region32
        $region31: #{tpu_custom_call.1} parent=11 // pred_region
          _
        $region32: #{tpu_custom_call.1} parent=11 // pred_fallthru
          _
        // Predicated region
        $region33: #{tpu_custom_call.1} parent=11 // pred_check
          %p299 = pneg %p175
        $region34: #{tpu_custom_call.1} parent=11 // pred_check_branch
          %301 = sbr.rel (%p299) target = $region36
        $region35: #{tpu_custom_call.1} parent=11 // pred_region
          _
        $region36: #{tpu_custom_call.1} parent=11 // pred_fallthru
          _
        // Predicated region
        $region37: #{tpu_custom_call.1} parent=11 // pred_check
          %p302 = pneg %p196
        $region38: #{tpu_custom_call.1} parent=11 // pred_check_branch
          %304 = sbr.rel (%p302) target = $region40
        $region39: #{tpu_custom_call.1} parent=11 // pred_region
          _
        $region40: #{tpu_custom_call.1} parent=11 // pred_fallthru
          _
        // Predicated region
        $region41: #{tpu_custom_call.1} parent=11 // pred_check
          %p305 = pneg %p217
        $region42: #{tpu_custom_call.1} parent=11 // pred_check_branch
          %307 = sbr.rel (%p305) target = $region44
        $region43: #{tpu_custom_call.1} parent=11 // pred_region
          _
        $region44: #{tpu_custom_call.1} parent=11 // pred_fallthru
          _
      $region12: #{tpu_custom_call.1} parent=5 // pred_fallthru
        _
      %p308 = scmp.lt.s32.totalorder %s23, 2
      // Predicated region
      $region45: #{tpu_custom_call.1} parent=5 // pred_check
        %p309 = pneg %p308
      $region46: #{tpu_custom_call.1} parent=5 // pred_check_branch
        %311 = sbr.rel (%p309) target = $region48
      $region47: #{tpu_custom_call.1} parent=5 // pred_region
        // Predicated region
        $region49: #{tpu_custom_call.1} parent=47 // pred_check
          %p312 = pneg %p43
        $region50: #{tpu_custom_call.1} parent=47 // pred_check_branch
          %314 = sbr.rel (%p312) target = $region52
        $region51: #{tpu_custom_call.1} parent=47 // pred_region
          %s315 = sand.u32 %s33, 1
          %s316 = sand.u32 %s33, 1
          %s317 = smul.addr %s316, 64
          %s318 = scalar_lea.vmem [#allocation2], %s317
          %s319 = smul.addr %s23, 2
          %s320 = smul.addr %s319, 8
          %s321 = scalar_lea.vmem %s0, %s320
          // Predicated region
          $region53: #{tpu_custom_call.1} parent=51 // pred_check
            _
          $region54: #{tpu_custom_call.1} parent=51 // pred_check_branch
            %323 = sbr.rel (0) target = $region56
          $region55: #{tpu_custom_call.1} parent=51 // pred_region
            // Predicated region
            $region57: #{tpu_custom_call.1} parent=55 // pred_check
              _
            $region58: #{tpu_custom_call.1} parent=55 // pred_check_branch
              %325 = sbr.rel (0) target = $region60
            $region59: #{tpu_custom_call.1} parent=55 // pred_region
              // Predicated region
              $region72: #{tpu_custom_call.1} parent=59 // pred_check
                _
              $region73: #{tpu_custom_call.1} parent=59 // pred_check_branch
                %354 = sbr.rel (0) target = $region75
              $region74: #{tpu_custom_call.1} parent=59 // pred_region
                loop: start=0, step=1, limit=1
                $region76: #{tpu_custom_call.1} parent=74 // loop_pre_header
                  _
                $region77: #{tpu_custom_call.1} parent=74 // loop_header
                  %s356 = sphi 0, %s360
                  %p357 = scmp.ge.s32.totalorder %s356, 1
                  %s361 = sphi %s321, %s321
                  %s362 = sphi %s318, %s318
                $region78: #{tpu_custom_call.1} parent=74 // loop_header_branch
                  %359 = sbr.rel (%p357) target = $region82
                $region79: #{tpu_custom_call.1} parent=74 // loop_body
                  %v363 = vld [vmem:[%s361] sm:$0xff]
                  %364 = vst [vmem:[%s362] sm:$0xff] %v363
                  %v365 = vld [vmem:[%s361 + $0x8] sm:$0xff]
                  %366 = vst [vmem:[%s362 + $0x8] sm:$0xff] %v365
                  %v367 = vld [vmem:[%s361 + $0x20] sm:$0xff]
                  %368 = vst [vmem:[%s362 + $0x10] sm:$0xff] %v367
                  %v369 = vld [vmem:[%s361 + $0x28] sm:$0xff]
                  %370 = vst [vmem:[%s362 + $0x18] sm:$0xff] %v369
                  %v371 = vld [vmem:[%s361 + $0x40] sm:$0xff]
                  %372 = vst [vmem:[%s362 + $0x20] sm:$0xff] %v371
                  %v373 = vld [vmem:[%s361 + $0x48] sm:$0xff]
                  %374 = vst [vmem:[%s362 + $0x28] sm:$0xff] %v373
                  %v375 = vld [vmem:[%s361 + $0x60] sm:$0xff]
                  %376 = vst [vmem:[%s362 + $0x30] sm:$0xff] %v375
                  %v377 = vld [vmem:[%s361 + $0x68] sm:$0xff]
                  %378 = vst [vmem:[%s362 + $0x38] sm:$0xff] %v377
                $region80: #{tpu_custom_call.1} parent=74 // loop_footer
                  %s360 = sadd.s32 1, %s356
                $region81: #{tpu_custom_call.1} parent=74 // loop_footer_branch
                  %355 = sbr.rel target = $region77
                $region82: #{tpu_custom_call.1} parent=74 // loop_exit
                  _
              $region75: #{tpu_custom_call.1} parent=59 // pred_fallthru
                _
              // Predicated region
              $region83: #{tpu_custom_call.1} parent=59 // pred_check
                _
              $region84: #{tpu_custom_call.1} parent=59 // pred_check_branch
                %380 = sbr.rel target = $region86
              $region85: #{tpu_custom_call.1} parent=59 // pred_region
                _
              $region86: #{tpu_custom_call.1} parent=59 // pred_fallthru
                _
            $region60: #{tpu_custom_call.1} parent=55 // pred_fallthru
              _
            // Predicated region
            $region61: #{tpu_custom_call.1} parent=55 // pred_check
              _
            $region62: #{tpu_custom_call.1} parent=55 // pred_check_branch
              %327 = sbr.rel target = $region64
            $region63: #{tpu_custom_call.1} parent=55 // pred_region
              loop: start=0, step=1, limit=1
              $region65: #{tpu_custom_call.1} parent=63 // loop_pre_header
                _
              $region66: #{tpu_custom_call.1} parent=63 // loop_header
                %s330 = sphi 0, %s334
                %p331 = scmp.ge.s32.totalorder %s330, 1
                %s335 = sphi %s321, %s321
                %s336 = sphi %s318, %s318
              $region67: #{tpu_custom_call.1} parent=63 // loop_header_branch
                %333 = sbr.rel (%p331) target = $region71
              $region68: #{tpu_custom_call.1} parent=63 // loop_body
                %v337 = vld [vmem:[%s335] sm:$0xff]
                %338 = vst [vmem:[%s336] sm:$0xff] %v337
                %v339 = vld [vmem:[%s335 + $0x8] sm:$0xff]
                %340 = vst [vmem:[%s336 + $0x8] sm:$0xff] %v339
                %v341 = vld [vmem:[%s335 + $0x20] sm:$0xff]
                %342 = vst [vmem:[%s336 + $0x10] sm:$0xff] %v341
                %v343 = vld [vmem:[%s335 + $0x28] sm:$0xff]
                %344 = vst [vmem:[%s336 + $0x18] sm:$0xff] %v343
                %v345 = vld [vmem:[%s335 + $0x40] sm:$0xff]
                %346 = vst [vmem:[%s336 + $0x20] sm:$0xff] %v345
                %v347 = vld [vmem:[%s335 + $0x48] sm:$0xff]
                %348 = vst [vmem:[%s336 + $0x28] sm:$0xff] %v347
                %v349 = vld [vmem:[%s335 + $0x60] sm:$0xff]
                %350 = vst [vmem:[%s336 + $0x30] sm:$0xff] %v349
                %v351 = vld [vmem:[%s335 + $0x68] sm:$0xff]
                %352 = vst [vmem:[%s336 + $0x38] sm:$0xff] %v351
              $region69: #{tpu_custom_call.1} parent=63 // loop_footer
                %s334 = sadd.s32 1, %s330
              $region70: #{tpu_custom_call.1} parent=63 // loop_footer_branch
                %329 = sbr.rel target = $region66
              $region71: #{tpu_custom_call.1} parent=63 // loop_exit
                _
            $region64: #{tpu_custom_call.1} parent=55 // pred_fallthru
              _
          $region56: #{tpu_custom_call.1} parent=51 // pred_fallthru
            _
          %381 = vnop
        $region52: #{tpu_custom_call.1} parent=47 // pred_fallthru
          _
      $region48: #{tpu_custom_call.1} parent=5 // pred_fallthru
        _
      %p382 = scmp.le.s32.totalorder 1, %s23
      %p383 = scmp.lt.s32.totalorder %s23, 3
      %p384 = pnand %p382, %p383
      %p385 = pneg %p384
      // Predicated region
      $region87: #{tpu_custom_call.1} parent=5 // pred_check
        _
      $region88: #{tpu_custom_call.1} parent=5 // pred_check_branch
        %387 = sbr.rel (%p384) target = $region90
      $region89: #{tpu_custom_call.1} parent=5 // pred_region
        %s388 = ssub.s32 %s23, 1
        %s389 = sand.u32 %s36, 1
        %s390 = sand.u32 %s36, 1
        %s391 = smul.addr %s390, 64
        %s392 = scalar_lea.vmem [#allocation2], %s391
        // Predicated region
        $region91: #{tpu_custom_call.1} parent=89 // pred_check
          %p393 = pneg %p49
        $region92: #{tpu_custom_call.1} parent=89 // pred_check_branch
          %395 = sbr.rel (%p393) target = $region94
        $region93: #{tpu_custom_call.1} parent=89 // pred_region
          _
        $region94: #{tpu_custom_call.1} parent=89 // pred_fallthru
          _
        %s396 = sand.u32 %s36, 1
        %s397 = sand.u32 %s36, 1
        %s398 = smul.addr %s397, 64
        %s399 = scalar_lea.vmem [#allocation2], %s398
        %p400 = pneg %p49
        %p401 = pneg %p46
        %p402 = pneg %p70
        %p403 = pneg %p67
        %p404 = pneg %p91
        %p405 = pneg %p88
        %p406 = pneg %p112
        %p407 = pneg %p109
        %p408 = pneg %p133
        %p409 = pneg %p130
        %p410 = pneg %p154
        %p411 = pneg %p151
        %p412 = pneg %p175
        %p413 = pneg %p172
        %p414 = pneg %p196
        %p415 = pneg %p193
        %p416 = pneg %p217
        %p417 = pneg %p214
        %p418 = pneg %p243
        %p419 = pneg %p240
        %s420 = sand.u32 %s230, 1
        %s421 = scalar_lea.sflag [#allocation4], %s420
        %s422 = sand.u32 %s230, 1
        %s423 = scalar_lea.vmem [#allocation3], %s422
        %p424 = pneg %p269
        %p425 = pneg %p266
        %s426 = sand.u32 %s256, 1
        %s427 = scalar_lea.sflag [#allocation6], %s426
        %s428 = sand.u32 %s256, 1
        %s429 = scalar_lea.vmem [#allocation5], %s428
        %v430 = vld [vmem:[%s392] sm:$0xff]
        %v431 = vld [vmem:[%s392 + $0x8] sm:$0xff]
        %v432 = vld [vmem:[%s392 + $0x10] sm:$0xff]
        %v433 = vld [vmem:[%s392 + $0x18] sm:$0xff]
        %v434 = vld [vmem:[%s392 + $0x20] sm:$0xff]
        %v435 = vld [vmem:[%s392 + $0x28] sm:$0xff]
        %v436 = vld [vmem:[%s392 + $0x30] sm:$0xff]
        %v437 = vld [vmem:[%s392 + $0x38] sm:$0xff]
        %vm438 = vcmask 64512
        %v439 = vsel %vm438, %v430, 0.0
        %440 = vadd.xlane.f32.xlu0 %v439
        %v441 = vpop.xlane.xlu0 %440
        %v442 = vsel %vm438, %v431, 0.0
        %443 = vadd.xlane.f32.xlu0 %v442
        %v444 = vpop.xlane.xlu0 %443
        %v445 = vsel %vm438, %v432, 0.0
        %446 = vadd.xlane.f32.xlu0 %v445
        %v447 = vpop.xlane.xlu0 %446
        %v448 = vsel %vm438, %v433, 0.0
        %449 = vadd.xlane.f32.xlu0 %v448
        %v450 = vpop.xlane.xlu0 %449
        %v451 = vsel %vm438, %v434, 0.0
        %452 = vadd.xlane.f32.xlu0 %v451
        %v453 = vpop.xlane.xlu0 %452
        %v454 = vsel %vm438, %v435, 0.0
        %455 = vadd.xlane.f32.xlu0 %v454
        %v456 = vpop.xlane.xlu0 %455
        %v457 = vsel %vm438, %v436, 0.0
        %458 = vadd.xlane.f32.xlu0 %v457
        %v459 = vpop.xlane.xlu0 %458
        %v460 = vsel %vm438, %v437, 0.0
        %461 = vadd.xlane.f32.xlu0 %v460
        %v462 = vpop.xlane.xlu0 %461
        %v463 = vmul.f32 %v441, 0.125
        %v464 = vmul.f32 %v444, 0.125
        %v465 = vmul.f32 %v447, 0.125
        %v466 = vmul.f32 %v450, 0.125
        %v467 = vmul.f32 %v453, 0.125
        %v468 = vmul.f32 %v456, 0.125
        %v469 = vmul.f32 %v459, 0.125
        %v470 = vmul.f32 %v462, 0.125
        %v471 = vsub.f32 %v430, %v463
        %v472 = vsub.f32 %v431, %v464
        %v473 = vsub.f32 %v432, %v465
        %v474 = vsub.f32 %v433, %v466
        %v475 = vsub.f32 %v434, %v467
        %v476 = vsub.f32 %v435, %v468
        %v477 = vsub.f32 %v436, %v469
        %v478 = vsub.f32 %v437, %v470
        %v479 = vmul.f32 %v471, %v471
        %v480 = vmul.f32 %v472, %v472
        %v481 = vmul.f32 %v473, %v473
        %v482 = vmul.f32 %v474, %v474
        %v483 = vmul.f32 %v475, %v475
        %v484 = vmul.f32 %v476, %v476
        %v485 = vmul.f32 %v477, %v477
        %v486 = vmul.f32 %v478, %v478
        %v487 = vsel %vm438, %v479, 0.0
        %488 = vadd.xlane.f32.xlu0 %v487
        %v489 = vpop.xlane.xlu0 %488
        %v490 = vsel %vm438, %v480, 0.0
        %491 = vadd.xlane.f32.xlu0 %v490
        %v492 = vpop.xlane.xlu0 %491
        %v493 = vsel %vm438, %v481, 0.0
        %494 = vadd.xlane.f32.xlu0 %v493
        %v495 = vpop.xlane.xlu0 %494
        %v496 = vsel %vm438, %v482, 0.0
        %497 = vadd.xlane.f32.xlu0 %v496
        %v498 = vpop.xlane.xlu0 %497
        %v499 = vsel %vm438, %v483, 0.0
        %500 = vadd.xlane.f32.xlu0 %v499
        %v501 = vpop.xlane.xlu0 %500
        %v502 = vsel %vm438, %v484, 0.0
        %503 = vadd.xlane.f32.xlu0 %v502
        %v504 = vpop.xlane.xlu0 %503
        %v505 = vsel %vm438, %v485, 0.0
        %506 = vadd.xlane.f32.xlu0 %v505
        %v507 = vpop.xlane.xlu0 %506
        %v508 = vsel %vm438, %v486, 0.0
        %509 = vadd.xlane.f32.xlu0 %v508
        %v510 = vpop.xlane.xlu0 %509
        %v511 = vrsqrt.pop %v489
        %v512 = vrsqrt.pop %v492
        %v513 = vrsqrt.pop %v495
        %v514 = vrsqrt.pop %v498
        %v515 = vrsqrt.pop %v501
        %v516 = vrsqrt.pop %v504
        %v517 = vrsqrt.pop %v507
        %v518 = vrsqrt.pop %v510
        %v519 = vmul.f32 %v471, %v511
        %v520 = vmul.f32 %v472, %v512
        %v521 = vmul.f32 %v473, %v513
        %v522 = vmul.f32 %v474, %v514
        %v523 = vmul.f32 %v475, %v515
        %v524 = vmul.f32 %v476, %v516
        %v525 = vmul.f32 %v477, %v517
        %v526 = vmul.f32 %v478, %v518
        %v528 = vsel %vm438, %v519, 0
        %v531 = vsel %vm438, %v520, 0
        %533 = vmatprep.subr.mxu0 0.0
        %534 = vmatpush1.xpose.msra.mxu0 %v528
        %535 = vmatprep.subr.mxu0 0.0
        %536 = vmatpush1.xpose.msra.mxu0 %v531
        %537 = vmatprep.subr.mxu0 0.0
        %538 = vmatpush1.xpose.msra.mxu0 0.0
        %539 = vmatprep.subr.mxu0 0.0
        %540 = vmatpush1.xpose.msra.mxu0 0.0
        %541 = vmatprep.subr.mxu0 0.0
        %542 = vmatpush1.xpose.msra.mxu0 0.0
        %543 = vmatprep.subr.mxu0 0.0
        %544 = vmatpush1.xpose.msra.mxu0 0.0
        %545 = vmatprep.subr.mxu0 0.0
        %546 = vmatpush1.xpose.msra.mxu0 0.0
        %547 = vmatprep.subr.mxu0 0.0
        %548 = vmatpush1.xpose.msra.mxu0 0.0
        %549 = vmatprep.subr.mxu0 0.0
        %550 = vmatpush1.xpose.msra.mxu0 0.0
        %551 = vmatprep.subr.mxu0 0.0
        %552 = vmatpush1.xpose.msra.mxu0 0.0
        %553 = vmatprep.subr.mxu0 0.0
        %554 = vmatpush1.xpose.msra.mxu0 0.0
        %555 = vmatprep.subr.mxu0 0.0
        %556 = vmatpush1.xpose.msra.mxu0 0.0
        %557 = vmatprep.subr.mxu0 0.0
        %558 = vmatpush1.xpose.msra.mxu0 0.0
        %559 = vmatprep.subr.mxu0 0.0
        %560 = vmatpush1.xpose.msra.mxu0 0.0
        %561 = vmatprep.subr.mxu0 0.0
        %562 = vmatpush1.xpose.msra.mxu0 0.0
        %563 = vmatprep.subr.mxu0 0.0
        %564 = vmatpush1.xpose.msra.mxu0 0.0
        %565 = vmatprep.subr.mxu0 0.0
        %566 = vmatpush1.xpose.msra.mxu0 0.0
        %567 = vmatprep.subr.mxu0 0.0
        %568 = vmatpush1.xpose.msra.mxu0 0.0
        %569 = vmatprep.subr.mxu0 0.0
        %570 = vmatpush1.xpose.msra.mxu0 0.0
        %571 = vmatprep.subr.mxu0 0.0
        %572 = vmatpush1.xpose.msra.mxu0 0.0
        %573 = vmatprep.subr.mxu0 0.0
        %574 = vmatpush1.xpose.msra.mxu0 0.0
        %575 = vmatprep.subr.mxu0 0.0
        %576 = vmatpush1.xpose.msra.mxu0 0.0
        %577 = vmatprep.subr.mxu0 0.0
        %578 = vmatpush1.xpose.msra.mxu0 0.0
        %579 = vmatprep.subr.mxu0 0.0
        %580 = vmatpush1.xpose.msra.mxu0 0.0
        %581 = vmatprep.subr.mxu0 0.0
        %582 = vmatpush1.xpose.msra.mxu0 0.0
        %583 = vmatprep.subr.mxu0 0.0
        %584 = vmatpush1.xpose.msra.mxu0 0.0
        %585 = vmatprep.subr.mxu0 0.0
        %586 = vmatpush1.xpose.msra.mxu0 0.0
        %587 = vmatprep.subr.mxu0 0.0
        %588 = vmatpush1.xpose.msra.mxu0 0.0
        %589 = vmatprep.subr.mxu0 0.0
        %590 = vmatpush1.xpose.msra.mxu0 0.0
        %591 = vmatprep.subr.mxu0 0.0
        %592 = vmatpush1.xpose.msra.mxu0 0.0
        %593 = vmatprep.subr.mxu0 0.0
        %594 = vmatpush1.xpose.msra.mxu0 0.0
        %595 = vmatprep.subr.mxu0 0.0
        %596 = vmatpush1.xpose.msra.mxu0 0.0
        %597 = vmatprep.mubr.f32.mxu0 0.0
        %598 = vmatmul.mubr.f32.gmra.mrb[0].mxu0 %v528
        %v599 = vpop.f32.mrb[0].mxu0
        %v600 = vadd.f32 0.0, %v599
        %v601 = vpop.f32.mrb[0].mxu0
        %602 = vmatprep.mubr.f32.mxu0 0.0
        %603 = vmatmul.mubr.f32.gmra.mrb[0].mxu0 %v531
        %v604 = vpop.f32.mrb[0].mxu0
        %v605 = vadd.f32 0.0, %v604
        %v606 = vpop.f32.mrb[0].mxu0
        %607 = vdwg.mxu0
        %v609 = vsel %vm438, %v521, 0
        %v612 = vsel %vm438, %v522, 0
        %614 = vmatprep.subr.mxu0 0.0
        %615 = vmatpush1.xpose.msra.mxu0 %v609
        %616 = vmatprep.subr.mxu0 0.0
        %617 = vmatpush1.xpose.msra.mxu0 %v612
        %618 = vmatprep.subr.mxu0 0.0
        %619 = vmatpush1.xpose.msra.mxu0 0.0
        %620 = vmatprep.subr.mxu0 0.0
        %621 = vmatpush1.xpose.msra.mxu0 0.0
        %622 = vmatprep.subr.mxu0 0.0
        %623 = vmatpush1.xpose.msra.mxu0 0.0
        %624 = vmatprep.subr.mxu0 0.0
        %625 = vmatpush1.xpose.msra.mxu0 0.0
        %626 = vmatprep.subr.mxu0 0.0
        %627 = vmatpush1.xpose.msra.mxu0 0.0
        %628 = vmatprep.subr.mxu0 0.0
        %629 = vmatpush1.xpose.msra.mxu0 0.0
        %630 = vmatprep.subr.mxu0 0.0
        %631 = vmatpush1.xpose.msra.mxu0 0.0
        %632 = vmatprep.subr.mxu0 0.0
        %633 = vmatpush1.xpose.msra.mxu0 0.0
        %634 = vmatprep.subr.mxu0 0.0
        %635 = vmatpush1.xpose.msra.mxu0 0.0
        %636 = vmatprep.subr.mxu0 0.0
        %637 = vmatpush1.xpose.msra.mxu0 0.0
        %638 = vmatprep.subr.mxu0 0.0
        %639 = vmatpush1.xpose.msra.mxu0 0.0
        %640 = vmatprep.subr.mxu0 0.0
        %641 = vmatpush1.xpose.msra.mxu0 0.0
        %642 = vmatprep.subr.mxu0 0.0
        %643 = vmatpush1.xpose.msra.mxu0 0.0
        %644 = vmatprep.subr.mxu0 0.0
        %645 = vmatpush1.xpose.msra.mxu0 0.0
        %646 = vmatprep.subr.mxu0 0.0
        %647 = vmatpush1.xpose.msra.mxu0 0.0
        %648 = vmatprep.subr.mxu0 0.0
        %649 = vmatpush1.xpose.msra.mxu0 0.0
        %650 = vmatprep.subr.mxu0 0.0
        %651 = vmatpush1.xpose.msra.mxu0 0.0
        %652 = vmatprep.subr.mxu0 0.0
        %653 = vmatpush1.xpose.msra.mxu0 0.0
        %654 = vmatprep.subr.mxu0 0.0
        %655 = vmatpush1.xpose.msra.mxu0 0.0
        %656 = vmatprep.subr.mxu0 0.0
        %657 = vmatpush1.xpose.msra.mxu0 0.0
        %658 = vmatprep.subr.mxu0 0.0
        %659 = vmatpush1.xpose.msra.mxu0 0.0
        %660 = vmatprep.subr.mxu0 0.0
        %661 = vmatpush1.xpose.msra.mxu0 0.0
        %662 = vmatprep.subr.mxu0 0.0
        %663 = vmatpush1.xpose.msra.mxu0 0.0
        %664 = vmatprep.subr.mxu0 0.0
        %665 = vmatpush1.xpose.msra.mxu0 0.0
        %666 = vmatprep.subr.mxu0 0.0
        %667 = vmatpush1.xpose.msra.mxu0 0.0
        %668 = vmatprep.subr.mxu0 0.0
        %669 = vmatpush1.xpose.msra.mxu0 0.0
        %670 = vmatprep.subr.mxu0 0.0
        %671 = vmatpush1.xpose.msra.mxu0 0.0
        %672 = vmatprep.subr.mxu0 0.0
        %673 = vmatpush1.xpose.msra.mxu0 0.0
        %674 = vmatprep.subr.mxu0 0.0
        %675 = vmatpush1.xpose.msra.mxu0 0.0
        %676 = vmatprep.subr.mxu0 0.0
        %677 = vmatpush1.xpose.msra.mxu0 0.0
        %678 = vmatprep.mubr.f32.mxu0 0.0
        %679 = vmatmul.mubr.f32.gmra.mrb[0].mxu0 %v609
        %v680 = vpop.f32.mrb[0].mxu0
        %v681 = vadd.f32 0.0, %v680
        %v682 = vpop.f32.mrb[0].mxu0
        %683 = vmatprep.mubr.f32.mxu0 0.0
        %684 = vmatmul.mubr.f32.gmra.mrb[0].mxu0 %v612
        %v685 = vpop.f32.mrb[0].mxu0
        %v686 = vadd.f32 0.0, %v685
        %v687 = vpop.f32.mrb[0].mxu0
        %688 = vdwg.mxu0
        %v690 = vsel %vm438, %v523, 0
        %v693 = vsel %vm438, %v524, 0
        %695 = vmatprep.subr.mxu0 0.0
        %696 = vmatpush1.xpose.msra.mxu0 %v690
        %697 = vmatprep.subr.mxu0 0.0
        %698 = vmatpush1.xpose.msra.mxu0 %v693
        %699 = vmatprep.subr.mxu0 0.0
        %700 = vmatpush1.xpose.msra.mxu0 0.0
        %701 = vmatprep.subr.mxu0 0.0
        %702 = vmatpush1.xpose.msra.mxu0 0.0
        %703 = vmatprep.subr.mxu0 0.0
        %704 = vmatpush1.xpose.msra.mxu0 0.0
        %705 = vmatprep.subr.mxu0 0.0
        %706 = vmatpush1.xpose.msra.mxu0 0.0
        %707 = vmatprep.subr.mxu0 0.0
        %708 = vmatpush1.xpose.msra.mxu0 0.0
        %709 = vmatprep.subr.mxu0 0.0
        %710 = vmatpush1.xpose.msra.mxu0 0.0
        %711 = vmatprep.subr.mxu0 0.0
        %712 = vmatpush1.xpose.msra.mxu0 0.0
        %713 = vmatprep.subr.mxu0 0.0
        %714 = vmatpush1.xpose.msra.mxu0 0.0
        %715 = vmatprep.subr.mxu0 0.0
        %716 = vmatpush1.xpose.msra.mxu0 0.0
        %717 = vmatprep.subr.mxu0 0.0
        %718 = vmatpush1.xpose.msra.mxu0 0.0
        %719 = vmatprep.subr.mxu0 0.0
        %720 = vmatpush1.xpose.msra.mxu0 0.0
        %721 = vmatprep.subr.mxu0 0.0
        %722 = vmatpush1.xpose.msra.mxu0 0.0
        %723 = vmatprep.subr.mxu0 0.0
        %724 = vmatpush1.xpose.msra.mxu0 0.0
        %725 = vmatprep.subr.mxu0 0.0
        %726 = vmatpush1.xpose.msra.mxu0 0.0
        %727 = vmatprep.subr.mxu0 0.0
        %728 = vmatpush1.xpose.msra.mxu0 0.0
        %729 = vmatprep.subr.mxu0 0.0
        %730 = vmatpush1.xpose.msra.mxu0 0.0
        %731 = vmatprep.subr.mxu0 0.0
        %732 = vmatpush1.xpose.msra.mxu0 0.0
        %733 = vmatprep.subr.mxu0 0.0
        %734 = vmatpush1.xpose.msra.mxu0 0.0
        %735 = vmatprep.subr.mxu0 0.0
        %736 = vmatpush1.xpose.msra.mxu0 0.0
        %737 = vmatprep.subr.mxu0 0.0
        %738 = vmatpush1.xpose.msra.mxu0 0.0
        %739 = vmatprep.subr.mxu0 0.0
        %740 = vmatpush1.xpose.msra.mxu0 0.0
        %741 = vmatprep.subr.mxu0 0.0
        %742 = vmatpush1.xpose.msra.mxu0 0.0
        %743 = vmatprep.subr.mxu0 0.0
        %744 = vmatpush1.xpose.msra.mxu0 0.0
        %745 = vmatprep.subr.mxu0 0.0
        %746 = vmatpush1.xpose.msra.mxu0 0.0
        %747 = vmatprep.subr.mxu0 0.0
        %748 = vmatpush1.xpose.msra.mxu0 0.0
        %749 = vmatprep.subr.mxu0 0.0
        %750 = vmatpush1.xpose.msra.mxu0 0.0
        %751 = vmatprep.subr.mxu0 0.0
        %752 = vmatpush1.xpose.msra.mxu0 0.0
        %753 = vmatprep.subr.mxu0 0.0
        %754 = vmatpush1.xpose.msra.mxu0 0.0
        %755 = vmatprep.subr.mxu0 0.0
        %756 = vmatpush1.xpose.msra.mxu0 0.0
        %757 = vmatprep.subr.mxu0 0.0
        %758 = vmatpush1.xpose.msra.mxu0 0.0
        %759 = vmatprep.mubr.f32.mxu0 0.0
        %760 = vmatmul.mubr.f32.gmra.mrb[0].mxu0 %v690
        %v761 = vpop.f32.mrb[0].mxu0
        %v762 = vadd.f32 0.0, %v761
        %v763 = vpop.f32.mrb[0].mxu0
        %764 = vmatprep.mubr.f32.mxu0 0.0
        %765 = vmatmul.mubr.f32.gmra.mrb[0].mxu0 %v693
        %v766 = vpop.f32.mrb[0].mxu0
        %v767 = vadd.f32 0.0, %v766
        %v768 = vpop.f32.mrb[0].mxu0
        %769 = vdwg.mxu0
        %v771 = vsel %vm438, %v525, 0
        %v774 = vsel %vm438, %v526, 0
        %776 = vmatprep.subr.mxu0 0.0
        %777 = vmatpush1.xpose.msra.mxu0 %v771
        %778 = vmatprep.subr.mxu0 0.0
        %779 = vmatpush1.xpose.msra.mxu0 %v774
        %780 = vmatprep.subr.mxu0 0.0
        %781 = vmatpush1.xpose.msra.mxu0 0.0
        %782 = vmatprep.subr.mxu0 0.0
        %783 = vmatpush1.xpose.msra.mxu0 0.0
        %784 = vmatprep.subr.mxu0 0.0
        %785 = vmatpush1.xpose.msra.mxu0 0.0
        %786 = vmatprep.subr.mxu0 0.0
        %787 = vmatpush1.xpose.msra.mxu0 0.0
        %788 = vmatprep.subr.mxu0 0.0
        %789 = vmatpush1.xpose.msra.mxu0 0.0
        %790 = vmatprep.subr.mxu0 0.0
        %791 = vmatpush1.xpose.msra.mxu0 0.0
        %792 = vmatprep.subr.mxu0 0.0
        %793 = vmatpush1.xpose.msra.mxu0 0.0
        %794 = vmatprep.subr.mxu0 0.0
        %795 = vmatpush1.xpose.msra.mxu0 0.0
        %796 = vmatprep.subr.mxu0 0.0
        %797 = vmatpush1.xpose.msra.mxu0 0.0
        %798 = vmatprep.subr.mxu0 0.0
        %799 = vmatpush1.xpose.msra.mxu0 0.0
        %800 = vmatprep.subr.mxu0 0.0
        %801 = vmatpush1.xpose.msra.mxu0 0.0
        %802 = vmatprep.subr.mxu0 0.0
        %803 = vmatpush1.xpose.msra.mxu0 0.0
        %804 = vmatprep.subr.mxu0 0.0
        %805 = vmatpush1.xpose.msra.mxu0 0.0
        %806 = vmatprep.subr.mxu0 0.0
        %807 = vmatpush1.xpose.msra.mxu0 0.0
        %808 = vmatprep.subr.mxu0 0.0
        %809 = vmatpush1.xpose.msra.mxu0 0.0
        %810 = vmatprep.subr.mxu0 0.0
        %811 = vmatpush1.xpose.msra.mxu0 0.0
        %812 = vmatprep.subr.mxu0 0.0
        %813 = vmatpush1.xpose.msra.mxu0 0.0
        %814 = vmatprep.subr.mxu0 0.0
        %815 = vmatpush1.xpose.msra.mxu0 0.0
        %816 = vmatprep.subr.mxu0 0.0
        %817 = vmatpush1.xpose.msra.mxu0 0.0
        %818 = vmatprep.subr.mxu0 0.0
        %819 = vmatpush1.xpose.msra.mxu0 0.0
        %820 = vmatprep.subr.mxu0 0.0
        %821 = vmatpush1.xpose.msra.mxu0 0.0
        %822 = vmatprep.subr.mxu0 0.0
        %823 = vmatpush1.xpose.msra.mxu0 0.0
        %824 = vmatprep.subr.mxu0 0.0
        %825 = vmatpush1.xpose.msra.mxu0 0.0
        %826 = vmatprep.subr.mxu0 0.0
        %827 = vmatpush1.xpose.msra.mxu0 0.0
        %828 = vmatprep.subr.mxu0 0.0
        %829 = vmatpush1.xpose.msra.mxu0 0.0
        %830 = vmatprep.subr.mxu0 0.0
        %831 = vmatpush1.xpose.msra.mxu0 0.0
        %832 = vmatprep.subr.mxu0 0.0
        %833 = vmatpush1.xpose.msra.mxu0 0.0
        %834 = vmatprep.subr.mxu0 0.0
        %835 = vmatpush1.xpose.msra.mxu0 0.0
        %836 = vmatprep.subr.mxu0 0.0
        %837 = vmatpush1.xpose.msra.mxu0 0.0
        %838 = vmatprep.subr.mxu0 0.0
        %839 = vmatpush1.xpose.msra.mxu0 0.0
        %840 = vmatprep.mubr.f32.mxu0 0.0
        %841 = vmatmul.mubr.f32.gmra.mrb[0].mxu0 %v771
        %v842 = vpop.f32.mrb[0].mxu0
        %v843 = vadd.f32 0.0, %v842
        %v844 = vpop.f32.mrb[0].mxu0
        %845 = vmatprep.mubr.f32.mxu0 0.0
        %846 = vmatmul.mubr.f32.gmra.mrb[0].mxu0 %v774
        %v847 = vpop.f32.mrb[0].mxu0
        %v848 = vadd.f32 0.0, %v847
        %v849 = vpop.f32.mrb[0].mxu0
        %850 = vdwg.mxu0
        %v851 = vld [vmem:[%s1] sm:$0xff]
        %v852 = vld [vmem:[%s1 + $0x8] sm:$0xff]
        %v853 = vld [vmem:[%s1 + $0x10] sm:$0xff]
        %v854 = vld [vmem:[%s1 + $0x18] sm:$0xff]
        %v855 = vld [vmem:[%s1 + $0x20] sm:$0xff]
        %v856 = vld [vmem:[%s1 + $0x28] sm:$0xff]
        %v857 = vld [vmem:[%s1 + $0x30] sm:$0xff]
        %v858 = vld [vmem:[%s1 + $0x38] sm:$0xff]
        %vm859 = vcmask 130048
        %v861 = vsel %vm859, %v600, 0
        %v864 = vsel %vm859, %v605, 0
        %866 = vmatprep.subr.mxu0 0.0
        %867 = vmatpush1.msra.mxu0 %v851
        %868 = vmatprep.subr.mxu0 0.0
        %869 = vmatpush1.msra.mxu0 %v852
        %870 = vmatprep.subr.mxu0 0.0
        %871 = vmatpush1.msra.mxu0 0.0
        %872 = vmatprep.subr.mxu0 0.0
        %873 = vmatpush1.msra.mxu0 0.0
        %874 = vmatprep.subr.mxu0 0.0
        %875 = vmatpush1.msra.mxu0 0.0
        %876 = vmatprep.subr.mxu0 0.0
        %877 = vmatpush1.msra.mxu0 0.0
        %878 = vmatprep.subr.mxu0 0.0
        %879 = vmatpush1.msra.mxu0 0.0
        %880 = vmatprep.subr.mxu0 0.0
        %881 = vmatpush1.msra.mxu0 0.0
        %882 = vmatprep.subr.mxu0 0.0
        %883 = vmatpush1.msra.mxu0 0.0
        %884 = vmatprep.subr.mxu0 0.0
        %885 = vmatpush1.msra.mxu0 0.0
        %886 = vmatprep.subr.mxu0 0.0
        %887 = vmatpush1.msra.mxu0 0.0
        %888 = vmatprep.subr.mxu0 0.0
        %889 = vmatpush1.msra.mxu0 0.0
        %890 = vmatprep.subr.mxu0 0.0
        %891 = vmatpush1.msra.mxu0 0.0
        %892 = vmatprep.subr.mxu0 0.0
        %893 = vmatpush1.msra.mxu0 0.0
        %894 = vmatprep.subr.mxu0 0.0
        %895 = vmatpush1.msra.mxu0 0.0
        %896 = vmatprep.subr.mxu0 0.0
        %897 = vmatpush1.msra.mxu0 0.0
        %898 = vmatprep.subr.mxu0 0.0
        %899 = vmatpush1.msra.mxu0 0.0
        %900 = vmatprep.subr.mxu0 0.0
        %901 = vmatpush1.msra.mxu0 0.0
        %902 = vmatprep.subr.mxu0 0.0
        %903 = vmatpush1.msra.mxu0 0.0
        %904 = vmatprep.subr.mxu0 0.0
        %905 = vmatpush1.msra.mxu0 0.0
        %906 = vmatprep.subr.mxu0 0.0
        %907 = vmatpush1.msra.mxu0 0.0
        %908 = vmatprep.subr.mxu0 0.0
        %909 = vmatpush1.msra.mxu0 0.0
        %910 = vmatprep.subr.mxu0 0.0
        %911 = vmatpush1.msra.mxu0 0.0
        %912 = vmatprep.subr.mxu0 0.0
        %913 = vmatpush1.msra.mxu0 0.0
        %914 = vmatprep.subr.mxu0 0.0
        %915 = vmatpush1.msra.mxu0 0.0
        %916 = vmatprep.subr.mxu0 0.0
        %917 = vmatpush1.msra.mxu0 0.0
        %918 = vmatprep.subr.mxu0 0.0
        %919 = vmatpush1.msra.mxu0 0.0
        %920 = vmatprep.subr.mxu0 0.0
        %921 = vmatpush1.msra.mxu0 0.0
        %922 = vmatprep.subr.mxu0 0.0
        %923 = vmatpush1.msra.mxu0 0.0
        %924 = vmatprep.subr.mxu0 0.0
        %925 = vmatpush1.msra.mxu0 0.0
        %926 = vmatprep.subr.mxu0 0.0
        %927 = vmatpush1.msra.mxu0 0.0
        %928 = vmatprep.subr.mxu0 0.0
        %929 = vmatpush1.msra.mxu0 0.0
        %930 = vmatprep.mubr.f32.mxu0 0.0
        %931 = vmatmul.mubr.f32.gmra.mrb[0].mxu0 %v861
        %v932 = vpop.f32.mrb[0].mxu0
        %v933 = vadd.f32 0.0, %v932
        %v934 = vpop.f32.mrb[0].mxu0
        %935 = vmatprep.mubr.f32.mxu0 0.0
        %936 = vmatmul.mubr.f32.gmra.mrb[0].mxu0 %v864
        %v937 = vpop.f32.mrb[0].mxu0
        %v938 = vadd.f32 0.0, %v937
        %v939 = vpop.f32.mrb[0].mxu0
        %940 = vdwg.mxu0
        %v942 = vsel %vm859, %v681, 0
        %v945 = vsel %vm859, %v686, 0
        %947 = vmatprep.subr.mxu0 0.0
        %948 = vmatpush1.msra.mxu0 %v853
        %949 = vmatprep.subr.mxu0 0.0
        %950 = vmatpush1.msra.mxu0 %v854
        %951 = vmatprep.subr.mxu0 0.0
        %952 = vmatpush1.msra.mxu0 0.0
        %953 = vmatprep.subr.mxu0 0.0
        %954 = vmatpush1.msra.mxu0 0.0
        %955 = vmatprep.subr.mxu0 0.0
        %956 = vmatpush1.msra.mxu0 0.0
        %957 = vmatprep.subr.mxu0 0.0
        %958 = vmatpush1.msra.mxu0 0.0
        %959 = vmatprep.subr.mxu0 0.0
        %960 = vmatpush1.msra.mxu0 0.0
        %961 = vmatprep.subr.mxu0 0.0
        %962 = vmatpush1.msra.mxu0 0.0
        %963 = vmatprep.subr.mxu0 0.0
        %964 = vmatpush1.msra.mxu0 0.0
        %965 = vmatprep.subr.mxu0 0.0
        %966 = vmatpush1.msra.mxu0 0.0
        %967 = vmatprep.subr.mxu0 0.0
        %968 = vmatpush1.msra.mxu0 0.0
        %969 = vmatprep.subr.mxu0 0.0
        %970 = vmatpush1.msra.mxu0 0.0
        %971 = vmatprep.subr.mxu0 0.0
        %972 = vmatpush1.msra.mxu0 0.0
        %973 = vmatprep.subr.mxu0 0.0
        %974 = vmatpush1.msra.mxu0 0.0
        %975 = vmatprep.subr.mxu0 0.0
        %976 = vmatpush1.msra.mxu0 0.0
        %977 = vmatprep.subr.mxu0 0.0
        %978 = vmatpush1.msra.mxu0 0.0
        %979 = vmatprep.subr.mxu0 0.0
        %980 = vmatpush1.msra.mxu0 0.0
        %981 = vmatprep.subr.mxu0 0.0
        %982 = vmatpush1.msra.mxu0 0.0
        %983 = vmatprep.subr.mxu0 0.0
        %984 = vmatpush1.msra.mxu0 0.0
        %985 = vmatprep.subr.mxu0 0.0
        %986 = vmatpush1.msra.mxu0 0.0
        %987 = vmatprep.subr.mxu0 0.0
        %988 = vmatpush1.msra.mxu0 0.0
        %989 = vmatprep.subr.mxu0 0.0
        %990 = vmatpush1.msra.mxu0 0.0
        %991 = vmatprep.subr.mxu0 0.0
        %992 = vmatpush1.msra.mxu0 0.0
        %993 = vmatprep.subr.mxu0 0.0
        %994 = vmatpush1.msra.mxu0 0.0
        %995 = vmatprep.subr.mxu0 0.0
        %996 = vmatpush1.msra.mxu0 0.0
        %997 = vmatprep.subr.mxu0 0.0
        %998 = vmatpush1.msra.mxu0 0.0
        %999 = vmatprep.subr.mxu0 0.0
        %1000 = vmatpush1.msra.mxu0 0.0
        %1001 = vmatprep.subr.mxu0 0.0
        %1002 = vmatpush1.msra.mxu0 0.0
        %1003 = vmatprep.subr.mxu0 0.0
        %1004 = vmatpush1.msra.mxu0 0.0
        %1005 = vmatprep.subr.mxu0 0.0
        %1006 = vmatpush1.msra.mxu0 0.0
        %1007 = vmatprep.subr.mxu0 0.0
        %1008 = vmatpush1.msra.mxu0 0.0
        %1009 = vmatprep.subr.mxu0 0.0
        %1010 = vmatpush1.msra.mxu0 0.0
        %1011 = vmatprep.mubr.f32.mxu0 0.0
        %1012 = vmatmul.mubr.f32.gmra.mrb[0].mxu0 %v942
        %v1013 = vpop.f32.mrb[0].mxu0
        %v1014 = vadd.f32 0.0, %v1013
        %v1015 = vpop.f32.mrb[0].mxu0
        %1016 = vmatprep.mubr.f32.mxu0 0.0
        %1017 = vmatmul.mubr.f32.gmra.mrb[0].mxu0 %v945
        %v1018 = vpop.f32.mrb[0].mxu0
        %v1019 = vadd.f32 0.0, %v1018
        %v1020 = vpop.f32.mrb[0].mxu0
        %1021 = vdwg.mxu0
        %v1023 = vsel %vm859, %v762, 0
        %v1026 = vsel %vm859, %v767, 0
        %1028 = vmatprep.subr.mxu0 0.0
        %1029 = vmatpush1.msra.mxu0 %v855
        %1030 = vmatprep.subr.mxu0 0.0
        %1031 = vmatpush1.msra.mxu0 %v856
        %1032 = vmatprep.subr.mxu0 0.0
        %1033 = vmatpush1.msra.mxu0 0.0
        %1034 = vmatprep.subr.mxu0 0.0
        %1035 = vmatpush1.msra.mxu0 0.0
        %1036 = vmatprep.subr.mxu0 0.0
        %1037 = vmatpush1.msra.mxu0 0.0
        %1038 = vmatprep.subr.mxu0 0.0
        %1039 = vmatpush1.msra.mxu0 0.0
        %1040 = vmatprep.subr.mxu0 0.0
        %1041 = vmatpush1.msra.mxu0 0.0
        %1042 = vmatprep.subr.mxu0 0.0
        %1043 = vmatpush1.msra.mxu0 0.0
        %1044 = vmatprep.subr.mxu0 0.0
        %1045 = vmatpush1.msra.mxu0 0.0
        %1046 = vmatprep.subr.mxu0 0.0
        %1047 = vmatpush1.msra.mxu0 0.0
        %1048 = vmatprep.subr.mxu0 0.0
        %1049 = vmatpush1.msra.mxu0 0.0
        %1050 = vmatprep.subr.mxu0 0.0
        %1051 = vmatpush1.msra.mxu0 0.0
        %1052 = vmatprep.subr.mxu0 0.0
        %1053 = vmatpush1.msra.mxu0 0.0
        %1054 = vmatprep.subr.mxu0 0.0
        %1055 = vmatpush1.msra.mxu0 0.0
        %1056 = vmatprep.subr.mxu0 0.0
        %1057 = vmatpush1.msra.mxu0 0.0
        %1058 = vmatprep.subr.mxu0 0.0
        %1059 = vmatpush1.msra.mxu0 0.0
        %1060 = vmatprep.subr.mxu0 0.0
        %1061 = vmatpush1.msra.mxu0 0.0
        %1062 = vmatprep.subr.mxu0 0.0
        %1063 = vmatpush1.msra.mxu0 0.0
        %1064 = vmatprep.subr.mxu0 0.0
        %1065 = vmatpush1.msra.mxu0 0.0
        %1066 = vmatprep.subr.mxu0 0.0
        %1067 = vmatpush1.msra.mxu0 0.0
        %1068 = vmatprep.subr.mxu0 0.0
        %1069 = vmatpush1.msra.mxu0 0.0
        %1070 = vmatprep.subr.mxu0 0.0
        %1071 = vmatpush1.msra.mxu0 0.0
        %1072 = vmatprep.subr.mxu0 0.0
        %1073 = vmatpush1.msra.mxu0 0.0
        %1074 = vmatprep.subr.mxu0 0.0
        %1075 = vmatpush1.msra.mxu0 0.0
        %1076 = vmatprep.subr.mxu0 0.0
        %1077 = vmatpush1.msra.mxu0 0.0
        %1078 = vmatprep.subr.mxu0 0.0
        %1079 = vmatpush1.msra.mxu0 0.0
        %1080 = vmatprep.subr.mxu0 0.0
        %1081 = vmatpush1.msra.mxu0 0.0
        %1082 = vmatprep.subr.mxu0 0.0
        %1083 = vmatpush1.msra.mxu0 0.0
        %1084 = vmatprep.subr.mxu0 0.0
        %1085 = vmatpush1.msra.mxu0 0.0
        %1086 = vmatprep.subr.mxu0 0.0
        %1087 = vmatpush1.msra.mxu0 0.0
        %1088 = vmatprep.subr.mxu0 0.0
        %1089 = vmatpush1.msra.mxu0 0.0
        %1090 = vmatprep.subr.mxu0 0.0
        %1091 = vmatpush1.msra.mxu0 0.0
        %1092 = vmatprep.mubr.f32.mxu0 0.0
        %1093 = vmatmul.mubr.f32.gmra.mrb[0].mxu0 %v1023
        %v1094 = vpop.f32.mrb[0].mxu0
        %v1095 = vadd.f32 0.0, %v1094
        %v1096 = vpop.f32.mrb[0].mxu0
        %1097 = vmatprep.mubr.f32.mxu0 0.0
        %1098 = vmatmul.mubr.f32.gmra.mrb[0].mxu0 %v1026
        %v1099 = vpop.f32.mrb[0].mxu0
        %v1100 = vadd.f32 0.0, %v1099
        %v1101 = vpop.f32.mrb[0].mxu0
        %1102 = vdwg.mxu0
        %v1104 = vsel %vm859, %v843, 0
        %v1107 = vsel %vm859, %v848, 0
        %1109 = vmatprep.subr.mxu0 0.0
        %1110 = vmatpush1.msra.mxu0 %v857
        %1111 = vmatprep.subr.mxu0 0.0
        %1112 = vmatpush1.msra.mxu0 %v858
        %1113 = vmatprep.subr.mxu0 0.0
        %1114 = vmatpush1.msra.mxu0 0.0
        %1115 = vmatprep.subr.mxu0 0.0
        %1116 = vmatpush1.msra.mxu0 0.0
        %1117 = vmatprep.subr.mxu0 0.0
        %1118 = vmatpush1.msra.mxu0 0.0
        %1119 = vmatprep.subr.mxu0 0.0
        %1120 = vmatpush1.msra.mxu0 0.0
        %1121 = vmatprep.subr.mxu0 0.0
        %1122 = vmatpush1.msra.mxu0 0.0
        %1123 = vmatprep.subr.mxu0 0.0
        %1124 = vmatpush1.msra.mxu0 0.0
        %1125 = vmatprep.subr.mxu0 0.0
        %1126 = vmatpush1.msra.mxu0 0.0
        %1127 = vmatprep.subr.mxu0 0.0
        %1128 = vmatpush1.msra.mxu0 0.0
        %1129 = vmatprep.subr.mxu0 0.0
        %1130 = vmatpush1.msra.mxu0 0.0
        %1131 = vmatprep.subr.mxu0 0.0
        %1132 = vmatpush1.msra.mxu0 0.0
        %1133 = vmatprep.subr.mxu0 0.0
        %1134 = vmatpush1.msra.mxu0 0.0
        %1135 = vmatprep.subr.mxu0 0.0
        %1136 = vmatpush1.msra.mxu0 0.0
        %1137 = vmatprep.subr.mxu0 0.0
        %1138 = vmatpush1.msra.mxu0 0.0
        %1139 = vmatprep.subr.mxu0 0.0
        %1140 = vmatpush1.msra.mxu0 0.0
        %1141 = vmatprep.subr.mxu0 0.0
        %1142 = vmatpush1.msra.mxu0 0.0
        %1143 = vmatprep.subr.mxu0 0.0
        %1144 = vmatpush1.msra.mxu0 0.0
        %1145 = vmatprep.subr.mxu0 0.0
        %1146 = vmatpush1.msra.mxu0 0.0
        %1147 = vmatprep.subr.mxu0 0.0
        %1148 = vmatpush1.msra.mxu0 0.0
        %1149 = vmatprep.subr.mxu0 0.0
        %1150 = vmatpush1.msra.mxu0 0.0
        %1151 = vmatprep.subr.mxu0 0.0
        %1152 = vmatpush1.msra.mxu0 0.0
        %1153 = vmatprep.subr.mxu0 0.0
        %1154 = vmatpush1.msra.mxu0 0.0
        %1155 = vmatprep.subr.mxu0 0.0
        %1156 = vmatpush1.msra.mxu0 0.0
        %1157 = vmatprep.subr.mxu0 0.0
        %1158 = vmatpush1.msra.mxu0 0.0
        %1159 = vmatprep.subr.mxu0 0.0
        %1160 = vmatpush1.msra.mxu0 0.0
        %1161 = vmatprep.subr.mxu0 0.0
        %1162 = vmatpush1.msra.mxu0 0.0
        %1163 = vmatprep.subr.mxu0 0.0
        %1164 = vmatpush1.msra.mxu0 0.0
        %1165 = vmatprep.subr.mxu0 0.0
        %1166 = vmatpush1.msra.mxu0 0.0
        %1167 = vmatprep.subr.mxu0 0.0
        %1168 = vmatpush1.msra.mxu0 0.0
        %1169 = vmatprep.subr.mxu0 0.0
        %1170 = vmatpush1.msra.mxu0 0.0
        %1171 = vmatprep.subr.mxu0 0.0
        %1172 = vmatpush1.msra.mxu0 0.0
        %1173 = vmatprep.mubr.f32.mxu0 0.0
        %1174 = vmatmul.mubr.f32.gmra.mrb[0].mxu0 %v1104
        %v1175 = vpop.f32.mrb[0].mxu0
        %v1176 = vadd.f32 0.0, %v1175
        %v1177 = vpop.f32.mrb[0].mxu0
        %1178 = vmatprep.mubr.f32.mxu0 0.0
        %1179 = vmatmul.mubr.f32.gmra.mrb[0].mxu0 %v1107
        %v1180 = vpop.f32.mrb[0].mxu0
        %v1181 = vadd.f32 0.0, %v1180
        %v1182 = vpop.f32.mrb[0].mxu0
        %1183 = vdwg.mxu0
        %v1184 = vsel %vm438, %v933, 0.0
        %v1185 = vsel %vm438, %v1014, 0.0
        %v1186 = vadd.f32 %v1184, %v1185
        %v1187 = vsel %vm438, %v1095, 0.0
        %v1188 = vadd.f32 %v1186, %v1187
        %v1189 = vsel %vm438, %v1176, 0.0
        %v1190 = vadd.f32 %v1188, %v1189
        %v1191 = vsel %vm438, %v938, 0.0
        %v1192 = vsel %vm438, %v1019, 0.0
        %v1193 = vadd.f32 %v1191, %v1192
        %v1194 = vsel %vm438, %v1100, 0.0
        %v1195 = vadd.f32 %v1193, %v1194
        %v1196 = vsel %vm438, %v1181, 0.0
        %v1197 = vadd.f32 %v1195, %v1196
        %v1198 = vld [vmem:[%s2] sm:$0x1]
        %v1200 = vlaneseq
        %v1201 = vshrl.u32 %v1200, 7
        %v1202 = vsub.s32 0, %v1201
        %v1203 = vrot.slane %v1198, %v1202
        %v1205 = vadd.f32 %v1190, %v1203
        %v1206 = vadd.f32 %v1197, %v1203
        %vm1207 = vcmp.gt.f32.partialorder %v1205, 0.0
        %vm1208 = vcmp.gt.f32.partialorder %v1206, 0.0
        %v1209 = vmul.f32 %v1205, 0.01
        %v1210 = vmul.f32 %v1206, 0.01
        %v1211 = vsel %vm1207, %v1205, %v1209
        %v1212 = vsel %vm1208, %v1206, %v1210
        %v1213 = vsel %vm438, %v1211, 0.0
        %1214 = vadd.xlane.f32.xlu0 %v1213
        %v1215 = vpop.xlane.xlu0 %1214
        %v1216 = vsel %vm438, %v1212, 0.0
        %1217 = vadd.xlane.f32.xlu0 %v1216
        %v1218 = vpop.xlane.xlu0 %1217
        %v1219 = vmul.f32 %v1215, 0.125
        %v1220 = vmul.f32 %v1218, 0.125
        %v1221 = vld [vmem:[%s3] sm:$0xff]
        %v1222 = vld [vmem:[%s3 + $0x8] sm:$0xff]
        %v1223 = vld [vmem:[%s4] sm:$0x1]
        %v1226 = vlaneseq
        %v1227 = vand.u32 %v1226, 127
        %v1228 = vlaneseq
        %v1229 = vshrl.u32 %v1228, 7
        %v1230 = vsub.s32 %v1227, %v1229
        %v1231 = vrot.slane %v1219, %v1230
        %v1232 = vadd.s32 %v1227, 4294967288
        %v1233 = vlaneseq
        %v1234 = vshrl.u32 %v1233, 7
        %v1235 = vsub.s32 %v1232, %v1234
        %v1236 = vrot.slane %v1220, %v1235
        %vm1237 = vcmask 130112
        %v1238 = vsel %vm1237, %v1236, %v1231
        %v1239 = vsel %vm859, %v1238, 0
        %1241 = vmatprep.subr.mxu0 0.0
        %1242 = vmatpush1.msra.mxu0 %v1221
        %1243 = vmatprep.subr.mxu0 0.0
        %1244 = vmatpush1.msra.mxu0 %v1222
        %1245 = vmatprep.subr.mxu0 0.0
        %1246 = vmatpush1.msra.mxu0 0.0
        %1247 = vmatprep.subr.mxu0 0.0
        %1248 = vmatpush1.msra.mxu0 0.0
        %1249 = vmatprep.subr.mxu0 0.0
        %1250 = vmatpush1.msra.mxu0 0.0
        %1251 = vmatprep.subr.mxu0 0.0
        %1252 = vmatpush1.msra.mxu0 0.0
        %1253 = vmatprep.subr.mxu0 0.0
        %1254 = vmatpush1.msra.mxu0 0.0
        %1255 = vmatprep.subr.mxu0 0.0
        %1256 = vmatpush1.msra.mxu0 0.0
        %1257 = vmatprep.subr.mxu0 0.0
        %1258 = vmatpush1.msra.mxu0 0.0
        %1259 = vmatprep.subr.mxu0 0.0
        %1260 = vmatpush1.msra.mxu0 0.0
        %1261 = vmatprep.subr.mxu0 0.0
        %1262 = vmatpush1.msra.mxu0 0.0
        %1263 = vmatprep.subr.mxu0 0.0
        %1264 = vmatpush1.msra.mxu0 0.0
        %1265 = vmatprep.subr.mxu0 0.0
        %1266 = vmatpush1.msra.mxu0 0.0
        %1267 = vmatprep.subr.mxu0 0.0
        %1268 = vmatpush1.msra.mxu0 0.0
        %1269 = vmatprep.subr.mxu0 0.0
        %1270 = vmatpush1.msra.mxu0 0.0
        %1271 = vmatprep.subr.mxu0 0.0
        %1272 = vmatpush1.msra.mxu0 0.0
        %1273 = vmatprep.subr.mxu0 0.0
        %1274 = vmatpush1.msra.mxu0 0.0
        %1275 = vmatprep.subr.mxu0 0.0
        %1276 = vmatpush1.msra.mxu0 0.0
        %1277 = vmatprep.subr.mxu0 0.0
        %1278 = vmatpush1.msra.mxu0 0.0
        %1279 = vmatprep.subr.mxu0 0.0
        %1280 = vmatpush1.msra.mxu0 0.0
        %1281 = vmatprep.subr.mxu0 0.0
        %1282 = vmatpush1.msra.mxu0 0.0
        %1283 = vmatprep.subr.mxu0 0.0
        %1284 = vmatpush1.msra.mxu0 0.0
        %1285 = vmatprep.subr.mxu0 0.0
        %1286 = vmatpush1.msra.mxu0 0.0
        %1287 = vmatprep.subr.mxu0 0.0
        %1288 = vmatpush1.msra.mxu0 0.0
        %1289 = vmatprep.subr.mxu0 0.0
        %1290 = vmatpush1.msra.mxu0 0.0
        %1291 = vmatprep.subr.mxu0 0.0
        %1292 = vmatpush1.msra.mxu0 0.0
        %1293 = vmatprep.subr.mxu0 0.0
        %1294 = vmatpush1.msra.mxu0 0.0
        %1295 = vmatprep.subr.mxu0 0.0
        %1296 = vmatpush1.msra.mxu0 0.0
        %1297 = vmatprep.subr.mxu0 0.0
        %1298 = vmatpush1.msra.mxu0 0.0
        %1299 = vmatprep.subr.mxu0 0.0
        %1300 = vmatpush1.msra.mxu0 0.0
        %1301 = vmatprep.subr.mxu0 0.0
        %1302 = vmatpush1.msra.mxu0 0.0
        %1303 = vmatprep.subr.mxu0 0.0
        %1304 = vmatpush1.msra.mxu0 0.0
        %1305 = vmatprep.mubr.f32.mxu0 0.0
        %1306 = vmatmul.mubr.f32.gmra.mrb[0].mxu0 %v1239
        %v1307 = vpop.f32.mrb[0].mxu0
        %v1308 = vadd.f32 %v1223, %v1307
        %v1309 = vpop.f32.mrb[0].mxu0
        %1310 = vdwg.mxu0
        %v1311 = vmax.f32 %v1308, 0.0
        %v1312 = vld [vmem:[%s5] sm:$0xf]
        %v1313 = vld [vmem:[%s6] sm:$0x1]
        %vm1314 = vcmask 31744
        %v1316 = vsel %vm1314, %v1311, 0
        %vm1318 = vcmask 1043456
        %v1320 = vsel %vm1318, %v1312, 0
        %1322 = vmatprep.subr.mxu0 0.0
        %1323 = vmatpush1.msra.mxu0 %v1320
        %1324 = vmatprep.subr.mxu0 0.0
        %1325 = vmatpush1.msra.mxu0 0.0
        %1326 = vmatprep.subr.mxu0 0.0
        %1327 = vmatpush1.msra.mxu0 0.0
        %1328 = vmatprep.subr.mxu0 0.0
        %1329 = vmatpush1.msra.mxu0 0.0
        %1330 = vmatprep.subr.mxu0 0.0
        %1331 = vmatpush1.msra.mxu0 0.0
        %1332 = vmatprep.subr.mxu0 0.0
        %1333 = vmatpush1.msra.mxu0 0.0
        %1334 = vmatprep.subr.mxu0 0.0
        %1335 = vmatpush1.msra.mxu0 0.0
        %1336 = vmatprep.subr.mxu0 0.0
        %1337 = vmatpush1.msra.mxu0 0.0
        %1338 = vmatprep.subr.mxu0 0.0
        %1339 = vmatpush1.msra.mxu0 0.0
        %1340 = vmatprep.subr.mxu0 0.0
        %1341 = vmatpush1.msra.mxu0 0.0
        %1342 = vmatprep.subr.mxu0 0.0
        %1343 = vmatpush1.msra.mxu0 0.0
        %1344 = vmatprep.subr.mxu0 0.0
        %1345 = vmatpush1.msra.mxu0 0.0
        %1346 = vmatprep.subr.mxu0 0.0
        %1347 = vmatpush1.msra.mxu0 0.0
        %1348 = vmatprep.subr.mxu0 0.0
        %1349 = vmatpush1.msra.mxu0 0.0
        %1350 = vmatprep.subr.mxu0 0.0
        %1351 = vmatpush1.msra.mxu0 0.0
        %1352 = vmatprep.subr.mxu0 0.0
        %1353 = vmatpush1.msra.mxu0 0.0
        %1354 = vmatprep.subr.mxu0 0.0
        %1355 = vmatpush1.msra.mxu0 0.0
        %1356 = vmatprep.subr.mxu0 0.0
        %1357 = vmatpush1.msra.mxu0 0.0
        %1358 = vmatprep.subr.mxu0 0.0
        %1359 = vmatpush1.msra.mxu0 0.0
        %1360 = vmatprep.subr.mxu0 0.0
        %1361 = vmatpush1.msra.mxu0 0.0
        %1362 = vmatprep.subr.mxu0 0.0
        %1363 = vmatpush1.msra.mxu0 0.0
        %1364 = vmatprep.subr.mxu0 0.0
        %1365 = vmatpush1.msra.mxu0 0.0
        %1366 = vmatprep.subr.mxu0 0.0
        %1367 = vmatpush1.msra.mxu0 0.0
        %1368 = vmatprep.subr.mxu0 0.0
        %1369 = vmatpush1.msra.mxu0 0.0
        %1370 = vmatprep.subr.mxu0 0.0
        %1371 = vmatpush1.msra.mxu0 0.0
        %1372 = vmatprep.subr.mxu0 0.0
        %1373 = vmatpush1.msra.mxu0 0.0
        %1374 = vmatprep.subr.mxu0 0.0
        %1375 = vmatpush1.msra.mxu0 0.0
        %1376 = vmatprep.subr.mxu0 0.0
        %1377 = vmatpush1.msra.mxu0 0.0
        %1378 = vmatprep.subr.mxu0 0.0
        %1379 = vmatpush1.msra.mxu0 0.0
        %1380 = vmatprep.subr.mxu0 0.0
        %1381 = vmatpush1.msra.mxu0 0.0
        %1382 = vmatprep.subr.mxu0 0.0
        %1383 = vmatpush1.msra.mxu0 0.0
        %1384 = vmatprep.subr.mxu0 0.0
        %1385 = vmatpush1.msra.mxu0 0.0
        %1386 = vmatprep.mubr.f32.mxu0 0.0
        %1387 = vmatmul.mubr.f32.gmra.mrb[0].mxu0 %v1316
        %v1388 = vpop.f32.mrb[0].mxu0
        %v1389 = vadd.f32 %v1313, %v1388
        %v1390 = vpop.f32.mrb[0].mxu0
        %1391 = vdwg.mxu0
        %v1392 = vxor.u32 %v1389, 2147483648
        %v1393 = vmul.f32 %v1392, 1.442695
        %v1394 = vpow.pop %v1393
        %v1395 = vadd.f32 %v1394, 1.0
        %v1396 = vrcp.pop %v1395
        %v1397 = vmul.f32 1.0, %v1396
        %v1398 = vlaneseq
        %v1399 = vshrl.u32 %v1398, 7
        %v1400 = vsub.s32 0, %v1399
        %v1401 = vrot.slane %v1397, %v1400
        %1403 = vbcast.lane.b32.xlu0 %v1401, 256
        %v1404 = vpop.permute.xlu0 %1403
        %s1406 = sor.u32 256, 8
        %1407 = vbcast.lane.b32.xlu0 %v1401, %s1406
        %v1408 = vpop.permute.xlu0 %1407
        %v1409 = vmul.f32 %v1404, %v1211
        %v1410 = vmul.f32 %v1408, %v1212
        %v1411 = vld [vmem:[%s7] sm:$0xff]
        %v1412 = vld [vmem:[%s7 + $0x8] sm:$0xff]
        %v1413 = vld [vmem:[%s7 + $0x10] sm:$0xff]
        %v1414 = vld [vmem:[%s7 + $0x18] sm:$0xff]
        %v1415 = vld [vmem:[%s7 + $0x20] sm:$0xff]
        %v1416 = vld [vmem:[%s7 + $0x28] sm:$0xff]
        %v1417 = vld [vmem:[%s7 + $0x30] sm:$0xff]
        %v1418 = vld [vmem:[%s7 + $0x38] sm:$0xff]
        %v1419 = vld [vmem:[%s7 + $0x40] sm:$0xff]
        %v1420 = vld [vmem:[%s7 + $0x48] sm:$0xff]
        %v1421 = vld [vmem:[%s7 + $0x50] sm:$0xff]
        %v1422 = vld [vmem:[%s7 + $0x58] sm:$0xff]
        %v1423 = vld [vmem:[%s7 + $0x60] sm:$0xff]
        %v1424 = vld [vmem:[%s7 + $0x68] sm:$0xff]
        %v1425 = vld [vmem:[%s7 + $0x70] sm:$0xff]
        %v1426 = vld [vmem:[%s7 + $0x78] sm:$0xff]
        %v1427 = vld [vmem:[%s7 + $0x80] sm:$0xff]
        %v1428 = vld [vmem:[%s7 + $0x88] sm:$0xff]
        %v1429 = vld [vmem:[%s7 + $0x90] sm:$0xff]
        %v1430 = vld [vmem:[%s7 + $0x98] sm:$0xff]
        %v1431 = vld [vmem:[%s7 + $0xa0] sm:$0xff]
        %v1432 = vld [vmem:[%s7 + $0xa8] sm:$0xff]
        %v1433 = vld [vmem:[%s7 + $0xb0] sm:$0xff]
        %v1434 = vld [vmem:[%s7 + $0xb8] sm:$0xff]
        %v1435 = vld [vmem:[%s7 + $0xc0] sm:$0xff]
        %v1436 = vld [vmem:[%s7 + $0xc8] sm:$0xff]
        %v1437 = vld [vmem:[%s7 + $0xd0] sm:$0xff]
        %v1438 = vld [vmem:[%s7 + $0xd8] sm:$0xff]
        %v1439 = vld [vmem:[%s7 + $0xe0] sm:$0xff]
        %v1440 = vld [vmem:[%s7 + $0xe8] sm:$0xff]
        %v1441 = vld [vmem:[%s7 + $0xf0] sm:$0xff]
        %v1442 = vld [vmem:[%s7 + $0xf8] sm:$0xff]
        %v1443 = vmul.f32 %v1409, %v1411
        %v1444 = vmul.f32 %v1410, %v1412
        %v1445 = vmul.f32 %v1409, %v1413
        %v1446 = vmul.f32 %v1410, %v1414
        %v1447 = vmul.f32 %v1409, %v1415
        %v1448 = vmul.f32 %v1410, %v1416
        %v1449 = vmul.f32 %v1409, %v1417
        %v1450 = vmul.f32 %v1410, %v1418
        %v1451 = vmul.f32 %v1409, %v1419
        %v1452 = vmul.f32 %v1410, %v1420
        %v1453 = vmul.f32 %v1409, %v1421
        %v1454 = vmul.f32 %v1410, %v1422
        %v1455 = vmul.f32 %v1409, %v1423
        %v1456 = vmul.f32 %v1410, %v1424
        %v1457 = vmul.f32 %v1409, %v1425
        %v1458 = vmul.f32 %v1410, %v1426
        %v1459 = vmul.f32 %v1409, %v1427
        %v1460 = vmul.f32 %v1410, %v1428
        %v1461 = vmul.f32 %v1409, %v1429
        %v1462 = vmul.f32 %v1410, %v1430
        %v1463 = vmul.f32 %v1409, %v1431
        %v1464 = vmul.f32 %v1410, %v1432
        %v1465 = vmul.f32 %v1409, %v1433
        %v1466 = vmul.f32 %v1410, %v1434
        %v1467 = vmul.f32 %v1409, %v1435
        %v1468 = vmul.f32 %v1410, %v1436
        %v1469 = vmul.f32 %v1409, %v1437
        %v1470 = vmul.f32 %v1410, %v1438
        %v1471 = vmul.f32 %v1409, %v1439
        %v1472 = vmul.f32 %v1410, %v1440
        %v1473 = vmul.f32 %v1409, %v1441
        %v1474 = vmul.f32 %v1410, %v1442
        %v1475 = vsel %vm438, %v1443, 0.0
        %1476 = vadd.xlane.f32.xlu0 %v1475
        %v1477 = vpop.xlane.xlu0 %1476
        %v1478 = vsel %vm438, %v1444, 0.0
        %1479 = vadd.xlane.f32.xlu0 %v1478
        %v1480 = vpop.xlane.xlu0 %1479
        %v1481 = vsel %vm438, %v1445, 0.0
        %1482 = vadd.xlane.f32.xlu0 %v1481
        %v1483 = vpop.xlane.xlu0 %1482
        %v1484 = vsel %vm438, %v1446, 0.0
        %1485 = vadd.xlane.f32.xlu0 %v1484
        %v1486 = vpop.xlane.xlu0 %1485
        %v1487 = vsel %vm438, %v1447, 0.0
        %1488 = vadd.xlane.f32.xlu0 %v1487
        %v1489 = vpop.xlane.xlu0 %1488
        %v1490 = vsel %vm438, %v1448, 0.0
        %1491 = vadd.xlane.f32.xlu0 %v1490
        %v1492 = vpop.xlane.xlu0 %1491
        %v1493 = vsel %vm438, %v1449, 0.0
        %1494 = vadd.xlane.f32.xlu0 %v1493
        %v1495 = vpop.xlane.xlu0 %1494
        %v1496 = vsel %vm438, %v1450, 0.0
        %1497 = vadd.xlane.f32.xlu0 %v1496
        %v1498 = vpop.xlane.xlu0 %1497
        %v1499 = vsel %vm438, %v1451, 0.0
        %1500 = vadd.xlane.f32.xlu0 %v1499
        %v1501 = vpop.xlane.xlu0 %1500
        %v1502 = vsel %vm438, %v1452, 0.0
        %1503 = vadd.xlane.f32.xlu0 %v1502
        %v1504 = vpop.xlane.xlu0 %1503
        %v1505 = vsel %vm438, %v1453, 0.0
        %1506 = vadd.xlane.f32.xlu0 %v1505
        %v1507 = vpop.xlane.xlu0 %1506
        %v1508 = vsel %vm438, %v1454, 0.0
        %1509 = vadd.xlane.f32.xlu0 %v1508
        %v1510 = vpop.xlane.xlu0 %1509
        %v1511 = vsel %vm438, %v1455, 0.0
        %1512 = vadd.xlane.f32.xlu0 %v1511
        %v1513 = vpop.xlane.xlu0 %1512
        %v1514 = vsel %vm438, %v1456, 0.0
        %1515 = vadd.xlane.f32.xlu0 %v1514
        %v1516 = vpop.xlane.xlu0 %1515
        %v1517 = vsel %vm438, %v1457, 0.0
        %1518 = vadd.xlane.f32.xlu0 %v1517
        %v1519 = vpop.xlane.xlu0 %1518
        %v1520 = vsel %vm438, %v1458, 0.0
        %1521 = vadd.xlane.f32.xlu0 %v1520
        %v1522 = vpop.xlane.xlu0 %1521
        %v1523 = vsel %vm438, %v1459, 0.0
        %1524 = vadd.xlane.f32.xlu0 %v1523
        %v1525 = vpop.xlane.xlu0 %1524
        %v1526 = vsel %vm438, %v1460, 0.0
        %1527 = vadd.xlane.f32.xlu0 %v1526
        %v1528 = vpop.xlane.xlu0 %1527
        %v1529 = vsel %vm438, %v1461, 0.0
        %1530 = vadd.xlane.f32.xlu0 %v1529
        %v1531 = vpop.xlane.xlu0 %1530
        %v1532 = vsel %vm438, %v1462, 0.0
        %1533 = vadd.xlane.f32.xlu0 %v1532
        %v1534 = vpop.xlane.xlu0 %1533
        %v1535 = vsel %vm438, %v1463, 0.0
        %1536 = vadd.xlane.f32.xlu0 %v1535
        %v1537 = vpop.xlane.xlu0 %1536
        %v1538 = vsel %vm438, %v1464, 0.0
        %1539 = vadd.xlane.f32.xlu0 %v1538
        %v1540 = vpop.xlane.xlu0 %1539
        %v1541 = vsel %vm438, %v1465, 0.0
        %1542 = vadd.xlane.f32.xlu0 %v1541
        %v1543 = vpop.xlane.xlu0 %1542
        %v1544 = vsel %vm438, %v1466, 0.0
        %1545 = vadd.xlane.f32.xlu0 %v1544
        %v1546 = vpop.xlane.xlu0 %1545
        %v1547 = vsel %vm438, %v1467, 0.0
        %1548 = vadd.xlane.f32.xlu0 %v1547
        %v1549 = vpop.xlane.xlu0 %1548
        %v1550 = vsel %vm438, %v1468, 0.0
        %1551 = vadd.xlane.f32.xlu0 %v1550
        %v1552 = vpop.xlane.xlu0 %1551
        %v1553 = vsel %vm438, %v1469, 0.0
        %1554 = vadd.xlane.f32.xlu0 %v1553
        %v1555 = vpop.xlane.xlu0 %1554
        %v1556 = vsel %vm438, %v1470, 0.0
        %1557 = vadd.xlane.f32.xlu0 %v1556
        %v1558 = vpop.xlane.xlu0 %1557
        %v1559 = vsel %vm438, %v1471, 0.0
        %1560 = vadd.xlane.f32.xlu0 %v1559
        %v1561 = vpop.xlane.xlu0 %1560
        %v1562 = vsel %vm438, %v1472, 0.0
        %1563 = vadd.xlane.f32.xlu0 %v1562
        %v1564 = vpop.xlane.xlu0 %1563
        %v1565 = vsel %vm438, %v1473, 0.0
        %1566 = vadd.xlane.f32.xlu0 %v1565
        %v1567 = vpop.xlane.xlu0 %1566
        %v1568 = vsel %vm438, %v1474, 0.0
        %1569 = vadd.xlane.f32.xlu0 %v1568
        %v1570 = vpop.xlane.xlu0 %1569
        %v1603 = vlaneseq
        %v1604 = vshrl.u32 %v1603, 7
        %v1605 = vsub.s32 %v1227, %v1604
        %v1606 = vrot.slane %v1477, %v1605
        %v1607 = vlaneseq
        %v1608 = vshrl.u32 %v1607, 7
        %v1609 = vsub.s32 %v1232, %v1608
        %v1610 = vrot.slane %v1480, %v1609
        %v1611 = vsel %vm1237, %v1610, %v1606
        %v1612 = vlaneseq
        %v1613 = vshrl.u32 %v1612, 7
        %v1614 = vsub.s32 %v1227, %v1613
        %v1615 = vrot.slane %v1483, %v1614
        %v1616 = vlaneseq
        %v1617 = vshrl.u32 %v1616, 7
        %v1618 = vsub.s32 %v1232, %v1617
        %v1619 = vrot.slane %v1486, %v1618
        %v1620 = vsel %vm1237, %v1619, %v1615
        %v1621 = vlaneseq
        %v1622 = vshrl.u32 %v1621, 7
        %v1623 = vsub.s32 %v1227, %v1622
        %v1624 = vrot.slane %v1489, %v1623
        %v1625 = vlaneseq
        %v1626 = vshrl.u32 %v1625, 7
        %v1627 = vsub.s32 %v1232, %v1626
        %v1628 = vrot.slane %v1492, %v1627
        %v1629 = vsel %vm1237, %v1628, %v1624
        %v1630 = vlaneseq
        %v1631 = vshrl.u32 %v1630, 7
        %v1632 = vsub.s32 %v1227, %v1631
        %v1633 = vrot.slane %v1495, %v1632
        %v1634 = vlaneseq
        %v1635 = vshrl.u32 %v1634, 7
        %v1636 = vsub.s32 %v1232, %v1635
        %v1637 = vrot.slane %v1498, %v1636
        %v1638 = vsel %vm1237, %v1637, %v1633
        %v1639 = vlaneseq
        %v1640 = vshrl.u32 %v1639, 7
        %v1641 = vsub.s32 %v1227, %v1640
        %v1642 = vrot.slane %v1501, %v1641
        %v1643 = vlaneseq
        %v1644 = vshrl.u32 %v1643, 7
        %v1645 = vsub.s32 %v1232, %v1644
        %v1646 = vrot.slane %v1504, %v1645
        %v1647 = vsel %vm1237, %v1646, %v1642
        %v1648 = vlaneseq
        %v1649 = vshrl.u32 %v1648, 7
        %v1650 = vsub.s32 %v1227, %v1649
        %v1651 = vrot.slane %v1507, %v1650
        %v1652 = vlaneseq
        %v1653 = vshrl.u32 %v1652, 7
        %v1654 = vsub.s32 %v1232, %v1653
        %v1655 = vrot.slane %v1510, %v1654
        %v1656 = vsel %vm1237, %v1655, %v1651
        %v1657 = vlaneseq
        %v1658 = vshrl.u32 %v1657, 7
        %v1659 = vsub.s32 %v1227, %v1658
        %v1660 = vrot.slane %v1513, %v1659
        %v1661 = vlaneseq
        %v1662 = vshrl.u32 %v1661, 7
        %v1663 = vsub.s32 %v1232, %v1662
        %v1664 = vrot.slane %v1516, %v1663
        %v1665 = vsel %vm1237, %v1664, %v1660
        %v1666 = vlaneseq
        %v1667 = vshrl.u32 %v1666, 7
        %v1668 = vsub.s32 %v1227, %v1667
        %v1669 = vrot.slane %v1519, %v1668
        %v1670 = vlaneseq
        %v1671 = vshrl.u32 %v1670, 7
        %v1672 = vsub.s32 %v1232, %v1671
        %v1673 = vrot.slane %v1522, %v1672
        %v1674 = vsel %vm1237, %v1673, %v1669
        %v1675 = vlaneseq
        %v1676 = vshrl.u32 %v1675, 7
        %v1677 = vsub.s32 %v1227, %v1676
        %v1678 = vrot.slane %v1525, %v1677
        %v1679 = vlaneseq
        %v1680 = vshrl.u32 %v1679, 7
        %v1681 = vsub.s32 %v1232, %v1680
        %v1682 = vrot.slane %v1528, %v1681
        %v1683 = vsel %vm1237, %v1682, %v1678
        %v1684 = vlaneseq
        %v1685 = vshrl.u32 %v1684, 7
        %v1686 = vsub.s32 %v1227, %v1685
        %v1687 = vrot.slane %v1531, %v1686
        %v1688 = vlaneseq
        %v1689 = vshrl.u32 %v1688, 7
        %v1690 = vsub.s32 %v1232, %v1689
        %v1691 = vrot.slane %v1534, %v1690
        %v1692 = vsel %vm1237, %v1691, %v1687
        %v1693 = vlaneseq
        %v1694 = vshrl.u32 %v1693, 7
        %v1695 = vsub.s32 %v1227, %v1694
        %v1696 = vrot.slane %v1537, %v1695
        %v1697 = vlaneseq
        %v1698 = vshrl.u32 %v1697, 7
        %v1699 = vsub.s32 %v1232, %v1698
        %v1700 = vrot.slane %v1540, %v1699
        %v1701 = vsel %vm1237, %v1700, %v1696
        %v1702 = vlaneseq
        %v1703 = vshrl.u32 %v1702, 7
        %v1704 = vsub.s32 %v1227, %v1703
        %v1705 = vrot.slane %v1543, %v1704
        %v1706 = vlaneseq
        %v1707 = vshrl.u32 %v1706, 7
        %v1708 = vsub.s32 %v1232, %v1707
        %v1709 = vrot.slane %v1546, %v1708
        %v1710 = vsel %vm1237, %v1709, %v1705
        %v1711 = vlaneseq
        %v1712 = vshrl.u32 %v1711, 7
        %v1713 = vsub.s32 %v1227, %v1712
        %v1714 = vrot.slane %v1549, %v1713
        %v1715 = vlaneseq
        %v1716 = vshrl.u32 %v1715, 7
        %v1717 = vsub.s32 %v1232, %v1716
        %v1718 = vrot.slane %v1552, %v1717
        %v1719 = vsel %vm1237, %v1718, %v1714
        %v1720 = vlaneseq
        %v1721 = vshrl.u32 %v1720, 7
        %v1722 = vsub.s32 %v1227, %v1721
        %v1723 = vrot.slane %v1555, %v1722
        %v1724 = vlaneseq
        %v1725 = vshrl.u32 %v1724, 7
        %v1726 = vsub.s32 %v1232, %v1725
        %v1727 = vrot.slane %v1558, %v1726
        %v1728 = vsel %vm1237, %v1727, %v1723
        %v1729 = vlaneseq
        %v1730 = vshrl.u32 %v1729, 7
        %v1731 = vsub.s32 %v1227, %v1730
        %v1732 = vrot.slane %v1561, %v1731
        %v1733 = vlaneseq
        %v1734 = vshrl.u32 %v1733, 7
        %v1735 = vsub.s32 %v1232, %v1734
        %v1736 = vrot.slane %v1564, %v1735
        %v1737 = vsel %vm1237, %v1736, %v1732
        %v1738 = vlaneseq
        %v1739 = vshrl.u32 %v1738, 7
        %v1740 = vsub.s32 %v1227, %v1739
        %v1741 = vrot.slane %v1567, %v1740
        %v1742 = vlaneseq
        %v1743 = vshrl.u32 %v1742, 7
        %v1744 = vsub.s32 %v1232, %v1743
        %v1745 = vrot.slane %v1570, %v1744
        %v1746 = vsel %vm1237, %v1745, %v1741
        %vm1747 = vcmask 1041409
        %v1748 = vsel %vm1747, %v1620, %v1611
        %vm1749 = vcmask 1042434
        %v1750 = vsel %vm1749, %v1629, %v1748
        %vm1751 = vcmask 1043459
        %v1752 = vsel %vm1751, %v1638, %v1750
        %vm1753 = vcmask 1044484
        %v1754 = vsel %vm1753, %v1647, %v1752
        %vm1755 = vcmask 1045509
        %v1756 = vsel %vm1755, %v1656, %v1754
        %vm1757 = vcmask 1046534
        %v1758 = vsel %vm1757, %v1665, %v1756
        %vm1759 = vcmask 1047559
        %v1760 = vsel %vm1759, %v1674, %v1758
        %v1761 = vsel %vm1747, %v1692, %v1683
        %v1762 = vsel %vm1749, %v1701, %v1761
        %v1763 = vsel %vm1751, %v1710, %v1762
        %v1764 = vsel %vm1753, %v1719, %v1763
        %v1765 = vsel %vm1755, %v1728, %v1764
        %v1766 = vsel %vm1757, %v1737, %v1765
        %v1767 = vsel %vm1759, %v1746, %v1766
        %v1770 = vsel %vm859, %v1760, 0.0
        %1771 = vadd.xlane.f32.xlu0 %v1770
        %v1772 = vpop.xlane.xlu0 %1771
        %v1773 = vsel %vm859, %v1767, 0.0
        %1774 = vadd.xlane.f32.xlu0 %v1773
        %v1775 = vpop.xlane.xlu0 %1774
        %v1776 = vld [vmem:[%s8] sm:$0x1]
        %v1778 = vlaneseq
        %v1779 = vshrl.u32 %v1778, 7
        %v1780 = vsub.s32 0, %v1779
        %v1781 = vrot.slane %v1776, %v1780
        %1783 = vbcast.lane.b32.xlu0 %v1781, 256
        %v1784 = vpop.permute.xlu0 %1783
        %s1786 = sor.u32 256, 8
        %1787 = vbcast.lane.b32.xlu0 %v1781, %s1786
        %v1788 = vpop.permute.xlu0 %1787
        %v1791 = vadd.f32 %v1772, %v1784
        %v1792 = vadd.f32 %v1775, %v1788
        %vm1793 = vcmp.gt.f32.partialorder %v1791, 0.0
        %vm1794 = vcmp.gt.f32.partialorder %v1792, 0.0
        %v1795 = vmul.f32 %v1791, 0.01
        %v1796 = vmul.f32 %v1792, 0.01
        %v1797 = vsel %vm1793, %v1791, %v1795
        %v1798 = vsel %vm1794, %v1792, %v1796
        %1801 = vset.pattern.permute.xlu0 0
        %1802 = vperm.xlu0 %1801, %v1797
        %v1803 = vpop.permute.xlu0 %1802
        %1804 = vset.pattern.permute.xlu0 0
        %1805 = vperm.xlu0 %1804, %v1798
        %v1806 = vpop.permute.xlu0 %1805
        %v1807 = vlaneseq
        %v1808 = vshrl.u32 %v1807, 7
        %v1809 = vsub.s32 %v1227, %v1808
        %v1810 = vrot.slane %v1803, %v1809
        %v1811 = vlaneseq
        %v1812 = vshrl.u32 %v1811, 7
        %v1813 = vsub.s32 %v1232, %v1812
        %v1814 = vrot.slane %v1806, %v1813
        %v1815 = vsel %vm1237, %v1814, %v1810
        %vm1817 = vcmask 122880
        %1818 = vst.msk [vmem:[%s423] sm:$0x1] %vm1817, %v1815
        %1819 = vst.msk [vmem:[%s429] sm:$0x1] %vm1817, %v1397
        %s1820 = sand.u32 %s230, 1
        %s1821 = scalar_lea.sflag [#allocation4], %s1820
        %s1822 = sand.u32 %s230, 1
        %s1823 = scalar_lea.vmem [#allocation3], %s1822
        %s1824 = sand.u32 %s256, 1
        %s1825 = scalar_lea.sflag [#allocation6], %s1824
        %s1826 = sand.u32 %s256, 1
        %s1827 = scalar_lea.vmem [#allocation5], %s1826
        // Predicated region
        $region95: #{tpu_custom_call.1} parent=89 // pred_check
          %p1828 = pneg %p240
        $region96: #{tpu_custom_call.1} parent=89 // pred_check_branch
          %1830 = sbr.rel (%p1828) target = $region98
        $region97: #{tpu_custom_call.1} parent=89 // pred_region
          %s1832 = ssub.s32 16, 16
          %1833 = vsyncadd %s1821, %s1832
          %s1834 = smul.addr %s28, 16
          %s1835 = scalar_lea.hbm %s9, %s1834
          %s1837 = sshll.u32 %s1823, 4
          %s1838 = int_to_ptr.vmem [resolvable:$true] %s1837
          %1840 = dma.vmem_to_hbm [thread:$0]  %s1838, 16, %s1835, %s1821
        $region98: #{tpu_custom_call.1} parent=89 // pred_fallthru
          _
        // Predicated region
        $region99: #{tpu_custom_call.1} parent=89 // pred_check
          %p1841 = pneg %p266
        $region100: #{tpu_custom_call.1} parent=89 // pred_check_branch
          %1843 = sbr.rel (%p1841) target = $region102
        $region101: #{tpu_custom_call.1} parent=89 // pred_region
          %s1845 = ssub.s32 16, 16
          %1846 = vsyncadd %s1825, %s1845
          %s1847 = smul.addr %s28, 16
          %s1848 = scalar_lea.hbm %s10, %s1847
          %s1850 = sshll.u32 %s1827, 4
          %s1851 = int_to_ptr.vmem [resolvable:$true] %s1850
          %1853 = dma.vmem_to_hbm [thread:$0]  %s1851, 16, %s1848, %s1825
        $region102: #{tpu_custom_call.1} parent=89 // pred_fallthru
          _
      $region90: #{tpu_custom_call.1} parent=5 // pred_fallthru
        _
      %p1854 = scmp.le.s32.totalorder 2, %s23
      // Predicated region
      $region103: #{tpu_custom_call.1} parent=5 // pred_check
        %p1855 = pneg %p1854
      $region104: #{tpu_custom_call.1} parent=5 // pred_check_branch
        %1857 = sbr.rel (%p1855) target = $region106
      $region105: #{tpu_custom_call.1} parent=5 // pred_region
        %s1858 = ssub.s32 %s23, 2
        // Predicated region
        $region107: #{tpu_custom_call.1} parent=105 // pred_check
          %p1859 = pneg %p246
        $region108: #{tpu_custom_call.1} parent=105 // pred_check_branch
          %1861 = sbr.rel (%p1859) target = $region110
        $region109: #{tpu_custom_call.1} parent=105 // pred_region
          %s1862 = sand.u32 %s231, 1
          %s1863 = scalar_lea.sflag [#allocation4], %s1862
          %s1864 = sand.u32 %s231, 1
          %s1865 = scalar_lea.vmem [#allocation3], %s1864
          %1866 = dma.done %s1863, 16
        $region110: #{tpu_custom_call.1} parent=105 // pred_fallthru
          _
        // Predicated region
        $region111: #{tpu_custom_call.1} parent=105 // pred_check
          %p1867 = pneg %p272
        $region112: #{tpu_custom_call.1} parent=105 // pred_check_branch
          %1869 = sbr.rel (%p1867) target = $region114
        $region113: #{tpu_custom_call.1} parent=105 // pred_region
          %s1870 = sand.u32 %s257, 1
          %s1871 = scalar_lea.sflag [#allocation6], %s1870
          %s1872 = sand.u32 %s257, 1
          %s1873 = scalar_lea.vmem [#allocation5], %s1872
          %1874 = dma.done %s1871, 16
        $region114: #{tpu_custom_call.1} parent=105 // pred_fallthru
          _
      $region106: #{tpu_custom_call.1} parent=5 // pred_fallthru
        _
    $region6: #{tpu_custom_call.1} parent=1 // loop_footer
      %s27 = sadd.s32 1, %s23
    $region7: #{tpu_custom_call.1} parent=1 // loop_footer_branch
      %22 = sbr.rel target = $region3
    $region8: #{tpu_custom_call.1} parent=1 // loop_exit
      _
    %1875 = vsyncpa [#allocation4], 1
    %s1876 = scalar_lea.sflag [#allocation4], 1
    %1877 = vsyncpa %s1876, 1
    %1878 = vsyncpa [#allocation6], 1
    %s1879 = scalar_lea.sflag [#allocation6], 1
    %1880 = vsyncpa %s1879, 1

</llo_original>
